<compile_context>
chip_gen: v5e
topology: v5e:2x2
jax: 0.10.0
libtpu: 0.0.40
codegen_flags: <defaults>
</compile_context>

<pallas_src>
import functools

import jax
import jax.numpy as jnp
from jax.experimental import pallas as pl
from jax.experimental.pallas import tpu as pltpu

_INV_SQRT2 = 0.7071067811865476


def _round_up(n: int, m: int) -> int:
    return ((n + m - 1) // m) * m


def _vmem_bytes(tm: int, dp: int, th: int, w_bufs: int) -> int:
    """Estimated VMEM working set (bytes) for one grid step."""
    act = (2 * tm * dp * 4      # x row tile (f32), double-buffered
           + 2 * tm * dp * 4    # output tile (f32 accumulator), double-buffered
           + tm * dp * 2        # cached post-LN activations (bf16 scratch)
           + 3 * dp * 4)        # ln_w, ln_b, b2 vectors
    wts = w_bufs * (dp * (2 * th) * 2   # fused W1||Wg tile (bf16)
                    + (2 * th) * 4      # fused b1||bg tile (f32)
                    + th * dp * 2)      # W2 tile (bf16)
    return act + wts


# --------------------------------------------------------------------------- #
# Kernel
# --------------------------------------------------------------------------- #
def _ffn_kernel(x_ref, ln_w_ref, ln_b_ref,
                w12_ref, b12_ref,
                w2_ref, b2_ref,
                o_ref,
                xn_ref,
                *, eps: float, d_model: int, th: int, approximate_gelu: bool):
    """Grid = (row tiles ["parallel"], hidden tiles ["arbitrary" reduction])."""
    k = pl.program_id(1)

    # ---- once per row tile: LayerNorm (f32), cache bf16 activations, seed output ----
    @pl.when(k == 0)
    def _init():
        x = x_ref[...]                                   # f32 row tile
        inv_d = 1.0 / d_model
        mean = jnp.sum(x, axis=-1, keepdims=True) * inv_d
        centered = x - mean
        if d_model != x.shape[-1]:
            # feature dim was zero-padded to a lane multiple: mask padded lanes
            # so the variance only sees real features.
            lane = jax.lax.broadcasted_iota(jnp.int32, x.shape, 1)
            centered = jnp.where(lane < d_model, centered, 0.0)
        var = jnp.sum(centered * centered, axis=-1, keepdims=True) * inv_d
        xn = centered * jax.lax.rsqrt(var + eps)
        xn = xn * ln_w_ref[...] + ln_b_ref[...]          # padded lanes stay 0
        xn_ref[...] = xn.astype(xn_ref.dtype)            # bf16 MXU input, cast once
        # Seed the f32 output tile with residual + down-projection bias: the
        # output block is the accumulator (no separate scratch, no finalize).
        o_ref[...] = x + b2_ref[...]

    # ---- per hidden tile: one fused up-projection (W1 || Wg), gated GELU, down-proj ----
    hg = jnp.dot(xn_ref[...], w12_ref[...], preferred_element_type=jnp.float32)
    hg = hg + b12_ref[...]                               # fused bias
    h = hg[:, :th]                                       # linear1 branch
    g = hg[:, th:]                                       # gate branch
    gate = jax.nn.sigmoid(g)                             # f32, EUP
    if approximate_gelu:
        # tanh GELU: transcendental goes to the EUP slot (frees VALU on v6e/v7x)
        # but deviates slightly from the exact-erf PyTorch reference.
        act = jax.nn.gelu(h, approximate=True)
    else:
        act = 0.5 * h * (1.0 + jax.lax.erf(h * _INV_SQRT2))   # exact GELU
    gated = (act * gate).astype(w2_ref.dtype)            # dropout = identity (eval mode)
    o_ref[...] += jnp.dot(gated, w2_ref[...], preferred_element_type=jnp.float32)


# --------------------------------------------------------------------------- #
# One-time parameter preparation (padding, W1||Wg fusion, bf16 casts, tiling plan)
# --------------------------------------------------------------------------- #
def prepare_params(params, *, tm: int = 256, th_max: int = 512,
                   compute_dtype=jnp.bfloat16):
    """Pad/fuse/cast the weights once and pick the tiling for this chip."""
    f32 = jnp.float32
    D, H = params["w1"].shape

    Dp = _round_up(D, 128)
    Hp = _round_up(H, 128)

    # ---- VMEM budget for this chip generation ----
    try:
        vmem_cap = int(pltpu.get_tpu_info().vmem_capacity_bytes)
    except Exception:  # pragma: no cover - conservative fallback (v7x per-core VMEM)
        vmem_cap = 64 << 20
    budget = vmem_cap - (8 << 20)          # headroom for Mosaic internal scratch

    tm = max(256, _round_up(tm, 256))      # MXU-pass granularity (128 would also be fine on v5e)

    if _vmem_bytes(tm, Dp, Hp, 1) <= budget:
        # Weights fully resident: single hidden tile, single-buffered weight specs.
        th, w_bufs = Hp, 1
    else:
        # Stream hidden tiles (double-buffered weights); shrink th until it fits,
        # then raise the row tile so AI (~tm flops per weight byte) clears the
        # MXU roofline knee (v6e ~680, v7x ~310).
        w_bufs = 2
        th = min(_round_up(th_max, 128), Hp)
        while th > 128 and _vmem_bytes(tm, Dp, th, w_bufs) > budget:
            th -= 128
        while tm > 128 and _vmem_bytes(tm, Dp, th, w_bufs) > budget:
            tm -= 128
        for cand in (1024, 768, 512):
            if cand > tm and _vmem_bytes(cand, Dp, th, w_bufs) <= budget:
                tm = cand
                break

    Hp = _round_up(Hp, th)
    nH = Hp // th

    # ---- pad operands (zero padding is exact: padded lanes/rows contribute nothing) ----
    ln_w = jnp.zeros((1, Dp), f32).at[0, :D].set(params["ln_w"])
    ln_b = jnp.zeros((1, Dp), f32).at[0, :D].set(params["ln_b"])
    b2 = jnp.zeros((1, Dp), f32).at[0, :D].set(params["b2"])

    w1 = jnp.zeros((Dp, Hp), f32).at[:D, :H].set(params["w1"])
    wg = jnp.zeros((Dp, Hp), f32).at[:D, :H].set(params["wg"])
    b1 = jnp.zeros((Hp,), f32).at[:H].set(params["b1"])
    bg = jnp.zeros((Hp,), f32).at[:H].set(params["bg"])
    w2 = jnp.zeros((Hp, Dp), f32).at[:H, :D].set(params["w2"]).astype(compute_dtype)

    # Fuse W1 || Wg per hidden tile: column block k = [W1 tile k | Wg tile k].
    w12 = jnp.stack([w1.reshape(Dp, nH, th), wg.reshape(Dp, nH, th)], axis=2)
    w12 = w12.reshape(Dp, 2 * Hp).astype(compute_dtype)
    b12 = jnp.stack([b1.reshape(nH, th), bg.reshape(nH, th)], axis=1).reshape(1, 2 * Hp)

    return {
        "ln_w": ln_w, "ln_b": ln_b, "b2": b2,
        "w12": w12, "b12": b12, "w2": w2,
        "meta": dict(D=D, H=H, Dp=Dp, Hp=Hp, th=th, nH=nH, tm=tm,
                     w_bufs=w_bufs, vmem_cap=vmem_cap),
    }


# --------------------------------------------------------------------------- #
# pallas_call builder + forward wrapper
# --------------------------------------------------------------------------- #
def _build_call(prep, *, tm_eff, Mp, Dp, th, nH, eps, d_model, approximate_gelu,
                single_buffer_weights, vmem_limit, use_buffered):
    def spec(shape, index_map, single):
        if single and use_buffered:
            try:
                return pl.BlockSpec(shape, index_map,
                                    pipeline_mode=pl.Buffered(buffer_count=1))
            except (TypeError, AttributeError):
                return pl.BlockSpec(shape, index_map)
        return pl.BlockSpec(shape, index_map)

    grid = (Mp // tm_eff, nH)
    return pl.pallas_call(
        functools.partial(_ffn_kernel, eps=eps, d_model=d_model, th=th,
                          approximate_gelu=approximate_gelu),
        out_shape=jax.ShapeDtypeStruct((Mp, Dp), jnp.float32),
        grid=grid,
        in_specs=[
            pl.BlockSpec((tm_eff, Dp), lambda i, k: (i, 0)),              # x rows (resident over k)
            spec((1, Dp), lambda i, k: (0, 0), True),                     # LayerNorm weight
            spec((1, Dp), lambda i, k: (0, 0), True),                     # LayerNorm bias
            spec((Dp, 2 * th), lambda i, k: (0, k), single_buffer_weights),  # fused W1 || Wg tile
            spec((1, 2 * th), lambda i, k: (0, k), single_buffer_weights),   # fused b1 || bg tile
            spec((th, Dp), lambda i, k: (k, 0), single_buffer_weights),      # W2 tile
            spec((1, Dp), lambda i, k: (0, 0), True),                     # b2
        ],
        out_specs=pl.BlockSpec((tm_eff, Dp), lambda i, k: (i, 0)),
        scratch_shapes=[pltpu.VMEM((tm_eff, Dp), prep["w12"].dtype)],     # cached post-LN (bf16)
        compiler_params=pltpu.CompilerParams(
            dimension_semantics=("parallel", "arbitrary"),
            vmem_limit_bytes=vmem_limit),
    )


def nexus_feed_forward(x, prepared, *, eps: float = 1e-5, approximate_gelu: bool = False):
    """x: (batch, seq, input_dim).  prepared: output of prepare_params()."""
    meta = prepared["meta"]
    D, Dp, th, nH = meta["D"], meta["Dp"], meta["th"], meta["nH"]
    tm, w_bufs, vmem_cap = meta["tm"], meta["w_bufs"], meta["vmem_cap"]
    assert x.shape[-1] == D, "feature dim mismatch with prepared params"

    B, S, _ = x.shape
    M = B * S

    # Row tile: large for arithmetic intensity, clamped (sublane-aligned) for tiny M.
    tm_eff = min(tm, _round_up(M, 8))
    # v7x has 2 TensorCores: when weights are resident extra row tiles are free,
    # so guarantee >= 2 tiles on the "parallel" axis when there are enough rows.
    if nH == 1 and M <= tm_eff and M >= 256:
        tm_eff = _round_up((M + 1) // 2, 128)
    Mp = _round_up(M, tm_eff)

    x2d = x.reshape(M, D).astype(jnp.float32)
    if (Mp, Dp) != (M, D):
        x2d = jnp.zeros((Mp, Dp), jnp.float32).at[:M, :D].set(x2d)

    vmem_need = _vmem_bytes(tm_eff, Dp, th, w_bufs)
    vmem_limit = int(min(vmem_cap, max(vmem_need + (16 << 20), 32 << 20)))

    kwargs = dict(tm_eff=tm_eff, Mp=Mp, Dp=Dp, th=th, nH=nH, eps=eps, d_model=D,
                  approximate_gelu=approximate_gelu,
                  single_buffer_weights=(w_bufs == 1), vmem_limit=vmem_limit)
    args = (x2d, prepared["ln_w"], prepared["ln_b"], prepared["w12"],
            prepared["b12"], prepared["w2"], prepared["b2"])

    try:
        out2d = _build_call(prepared, use_buffered=True, **kwargs)(*args)
        jax.block_until_ready(out2d)
    except Exception:
        # TODO(synk): pl.Buffered(1) single-buffering rejected by this jax/Mosaic
        # version -- fall back to default double-buffered BlockSpecs.
        out2d = _build_call(prepared, use_buffered=False, **kwargs)(*args)

    return out2d[:M, :D].reshape(B, S, D).astype(x.dtype)


# --------------------------------------------------------------------------- #
# Synthetic parameters + pure-JAX reference
# --------------------------------------------------------------------------- #
def init_params(key, input_dim: int, hidden_dim: int):
    """Deterministic synthetic parameters; linear weights stored as (in, out)."""
    ks = jax.random.split(key, 8)
    scale_in = 1.0 / jnp.sqrt(jnp.float32(input_dim))
    scale_hid = 1.0 / jnp.sqrt(jnp.float32(hidden_dim))
    return {
        "ln_w": jax.random.normal(ks[0], (input_dim,), jnp.float32) * 0.1 + 1.0,
        "ln_b": jax.random.normal(ks[1], (input_dim,), jnp.float32) * 0.1,
        "w1": jax.random.normal(ks[2], (input_dim, hidden_dim), jnp.float32) * scale_in,
        "b1": jax.random.normal(ks[3], (hidden_dim,), jnp.float32) * scale_in,
        "wg": jax.random.normal(ks[4], (input_dim, hidden_dim), jnp.float32) * scale_in,
        "bg": jax.random.normal(ks[5], (hidden_dim,), jnp.float32) * scale_in,
        "w2": jax.random.normal(ks[6], (hidden_dim, input_dim), jnp.float32) * scale_hid,
        "b2": jax.random.normal(ks[7], (input_dim,), jnp.float32) * scale_hid,
    }


def _reference(x, p, eps=1e-5):
    # Pure-JAX f32 reference mirroring the PyTorch forward (eval mode).
    mean = jnp.mean(x, axis=-1, keepdims=True)
    var = jnp.mean((x - mean) ** 2, axis=-1, keepdims=True)
    xn = (x - mean) / jnp.sqrt(var + eps) * p["ln_w"] + p["ln_b"]
    gate = jax.nn.sigmoid(xn @ p["wg"] + p["bg"])
    h = jax.nn.gelu(xn @ p["w1"] + p["b1"], approximate=False)
    h = h * gate
    return h @ p["w2"] + p["b2"] + x


if __name__ == "__main__":
    batch, seq, input_dim, hidden_dim = 2, 8, 32, 64

    key = jax.random.PRNGKey(0)
    k_x, k_p = jax.random.split(key)
    x = jax.random.normal(k_x, (batch, seq, input_dim), jnp.float32)
    params = init_params(k_p, input_dim, hidden_dim)

    prepared = prepare_params(params)          # one-time weight prep (pad/fuse/bf16 cast)
    out = jax.block_until_ready(nexus_feed_forward(x, prepared))
    ref = _reference(x, params)

    assert out.shape == (batch, seq, input_dim)
    # bf16 matmul operands with f32 accumulation -> loosened tolerance vs f32 reference.
    assert jnp.allclose(out, ref, atol=5e-2, rtol=5e-2), (
        f"mismatch vs reference, max abs err = {float(jnp.max(jnp.abs(out - ref)))}")

    print("KERNEL_OK")
</pallas_src>

<mosaic_0001>
module attributes {stable_mosaic.version = 11 : i64} {
  func.func @_ffn_kernel(%arg0: i32, %arg1: i32, %arg2: memref<16x128xf32, #tpu.memory_space<vmem>>, %arg3: memref<1x128xf32, #tpu.memory_space<vmem>>, %arg4: memref<1x128xf32, #tpu.memory_space<vmem>>, %arg5: memref<128x256xbf16, #tpu.memory_space<vmem>>, %arg6: memref<1x256xf32, #tpu.memory_space<vmem>>, %arg7: memref<128x128xbf16, #tpu.memory_space<vmem>>, %arg8: memref<1x128xf32, #tpu.memory_space<vmem>>, %arg9: memref<16x128xf32, #tpu.memory_space<vmem>>, %arg10: memref<16x128xbf16, #tpu.memory_space<vmem>>) attributes {dimension_semantics = [#tpu.dimension_semantics<parallel>, #tpu.dimension_semantics<arbitrary>], iteration_bounds = array<i64: 1, 1>, scalar_prefetch = 0 : i64, scratch_operands = 1 : i64, tpu.core_type = #tpu.core_type<tc>, window_params = [{transform_indices = @transform_0, window_bounds = array<i64: 16, 128>}, {pipeline_mode = #tpu.pipeline_mode<synchronous>, transform_indices = @transform_1, window_bounds = array<i64: 1, 128>}, {pipeline_mode = #tpu.pipeline_mode<synchronous>, transform_indices = @transform_2, window_bounds = array<i64: 1, 128>}, {pipeline_mode = #tpu.pipeline_mode<synchronous>, transform_indices = @transform_3, window_bounds = array<i64: 128, 256>}, {pipeline_mode = #tpu.pipeline_mode<synchronous>, transform_indices = @transform_4, window_bounds = array<i64: 1, 256>}, {pipeline_mode = #tpu.pipeline_mode<synchronous>, transform_indices = @transform_5, window_bounds = array<i64: 128, 128>}, {pipeline_mode = #tpu.pipeline_mode<synchronous>, transform_indices = @transform_6, window_bounds = array<i64: 1, 128>}, {transform_indices = @transform_7, window_bounds = array<i64: 16, 128>}]} {
    %c0_i32 = arith.constant 0 : i32
    %0 = arith.cmpi eq, %arg1, %c0_i32 : i32
    %1 = arith.extui %0 : i1 to i32
    %c0_i32_0 = arith.constant 0 : i32
    %2 = arith.cmpi ne, %1, %c0_i32_0 : i32
    scf.if %2 {
      %c0_17 = arith.constant 0 : index
      %c0_18 = arith.constant 0 : index
      %31 = vector.load %arg2[%c0_17, %c0_18] : memref<16x128xf32, #tpu.memory_space<vmem>>, vector<16x128xf32>
      %cst_19 = arith.constant dense<0.000000e+00> : vector<16xf32>
      %32 = vector.multi_reduction <add>, %31, %cst_19 [1] : vector<16x128xf32> to vector<16xf32>
      %33 = vector.shape_cast %32 : vector<16xf32> to vector<16x1xf32>
      %cst_20 = arith.constant 3.125000e-02 : f32
      %34 = vector.broadcast %cst_20 : f32 to vector<16x1xf32>
      %35 = arith.mulf %33, %34 : vector<16x1xf32>
      %36 = vector.broadcast %35 : vector<16x1xf32> to vector<16x128xf32>
      %37 = arith.subf %31, %36 : vector<16x128xf32>
      %38 = tpu.iota {dimensions = array<i32: 1>} : vector<16x128xi32>
      %c32_i32 = arith.constant 32 : i32
      %39 = vector.broadcast %c32_i32 : i32 to vector<16x128xi32>
      %40 = arith.cmpi slt, %38, %39 : vector<16x128xi32>
      %cst_21 = arith.constant 0.000000e+00 : f32
      %41 = vector.broadcast %cst_21 : f32 to vector<16x128xf32>
      %42 = arith.select %40, %37, %41 : vector<16x128xi1>, vector<16x128xf32>
      %43 = arith.mulf %42, %42 : vector<16x128xf32>
      %cst_22 = arith.constant dense<0.000000e+00> : vector<16xf32>
      %44 = vector.multi_reduction <add>, %43, %cst_22 [1] : vector<16x128xf32> to vector<16xf32>
      %45 = vector.shape_cast %44 : vector<16xf32> to vector<16x1xf32>
      %cst_23 = arith.constant 3.125000e-02 : f32
      %46 = vector.broadcast %cst_23 : f32 to vector<16x1xf32>
      %47 = arith.mulf %45, %46 : vector<16x1xf32>
      %cst_24 = arith.constant 9.99999974E-6 : f32
      %48 = vector.broadcast %cst_24 : f32 to vector<16x1xf32>
      %49 = arith.addf %47, %48 : vector<16x1xf32>
      %50 = math.rsqrt %49 : vector<16x1xf32>
      %51 = vector.broadcast %50 : vector<16x1xf32> to vector<16x128xf32>
      %52 = arith.mulf %42, %51 : vector<16x128xf32>
      %c0_25 = arith.constant 0 : index
      %c0_26 = arith.constant 0 : index
      %53 = vector.load %arg3[%c0_25, %c0_26] : memref<1x128xf32, #tpu.memory_space<vmem>>, vector<1x128xf32>
      %54 = vector.broadcast %53 : vector<1x128xf32> to vector<16x128xf32>
      %55 = arith.mulf %52, %54 : vector<16x128xf32>
      %c0_27 = arith.constant 0 : index
      %c0_28 = arith.constant 0 : index
      %56 = vector.load %arg4[%c0_27, %c0_28] : memref<1x128xf32, #tpu.memory_space<vmem>>, vector<1x128xf32>
      %57 = vector.broadcast %56 : vector<1x128xf32> to vector<16x128xf32>
      %58 = arith.addf %55, %57 : vector<16x128xf32>
      %59 = arith.truncf %58 : vector<16x128xf32> to vector<16x128xbf16>
      %c0_29 = arith.constant 0 : index
      %c0_30 = arith.constant 0 : index
      %60 = vector.load %arg10[%c0_29, %c0_30] : memref<16x128xbf16, #tpu.memory_space<vmem>>, vector<16x128xbf16>
      tpu.vector_store %arg10[%c0_29, %c0_30], %59 {strides = array<i32>} : memref<16x128xbf16, #tpu.memory_space<vmem>>, vector<16x128xbf16>,
      %c0_31 = arith.constant 0 : index
      %c0_32 = arith.constant 0 : index
      %61 = vector.load %arg8[%c0_31, %c0_32] : memref<1x128xf32, #tpu.memory_space<vmem>>, vector<1x128xf32>
      %62 = vector.broadcast %61 : vector<1x128xf32> to vector<16x128xf32>
      %63 = arith.addf %31, %62 : vector<16x128xf32>
      %c0_33 = arith.constant 0 : index
      %c0_34 = arith.constant 0 : index
      %64 = vector.load %arg9[%c0_33, %c0_34] : memref<16x128xf32, #tpu.memory_space<vmem>>, vector<16x128xf32>
      tpu.vector_store %arg9[%c0_33, %c0_34], %63 {strides = array<i32>} : memref<16x128xf32, #tpu.memory_space<vmem>>, vector<16x128xf32>,
    } else {
    }
    %c0 = arith.constant 0 : index
    %c0_1 = arith.constant 0 : index
    %3 = vector.load %arg10[%c0, %c0_1] : memref<16x128xbf16, #tpu.memory_space<vmem>>, vector<16x128xbf16>
    %c0_2 = arith.constant 0 : index
    %c0_3 = arith.constant 0 : index
    %4 = vector.load %arg5[%c0_2, %c0_3] : memref<128x256xbf16, #tpu.memory_space<vmem>>, vector<128x256xbf16>
    %cst = arith.constant dense<0.000000e+00> : vector<16x256xf32>
    %5 = tpu.matmul %3, %4, %cst {dimension_numbers = #tpu.dot_dimension_numbers<[1], [0], [0], [1], [0, 0, 1, 1], [], []>} : vector<16x128xbf16>, vector<128x256xbf16>, vector<16x256xf32> -> vector<16x256xf32>
    %c0_4 = arith.constant 0 : index
    %c0_5 = arith.constant 0 : index
    %6 = vector.load %arg6[%c0_4, %c0_5] : memref<1x256xf32, #tpu.memory_space<vmem>>, vector<1x256xf32>
    %7 = vector.broadcast %6 : vector<1x256xf32> to vector<16x256xf32>
    %8 = arith.addf %5, %7 : vector<16x256xf32>
    %9 = vector.extract_strided_slice %8 {offsets = [0, 0], sizes = [16, 128], strides = [1, 1]} : vector<16x256xf32> to vector<16x128xf32>
    %10 = vector.extract_strided_slice %8 {offsets = [0, 128], sizes = [16, 128], strides = [1, 1]} : vector<16x256xf32> to vector<16x128xf32>
    %11 = arith.negf %10 : vector<16x128xf32>
    %12 = math.exp %11 : vector<16x128xf32>
    %cst_6 = arith.constant 1.000000e+00 : f32
    %13 = vector.broadcast %cst_6 : f32 to vector<16x128xf32>
    %14 = arith.addf %13, %12 : vector<16x128xf32>
    %15 = arith.divf %13, %14 : vector<16x128xf32>
    %cst_7 = arith.constant 5.000000e-01 : f32
    %16 = vector.broadcast %cst_7 : f32 to vector<16x128xf32>
    %17 = arith.mulf %16, %9 : vector<16x128xf32>
    %cst_8 = arith.constant 0.707106769 : f32
    %18 = vector.broadcast %cst_8 : f32 to vector<16x128xf32>
    %19 = arith.mulf %9, %18 : vector<16x128xf32>
    %20 = math.erf %19 : vector<16x128xf32>
    %cst_9 = arith.constant 1.000000e+00 : f32
    %21 = vector.broadcast %cst_9 : f32 to vector<16x128xf32>
    %22 = arith.addf %21, %20 : vector<16x128xf32>
    %23 = arith.mulf %17, %22 : vector<16x128xf32>
    %24 = arith.mulf %23, %15 : vector<16x128xf32>
    %25 = arith.truncf %24 : vector<16x128xf32> to vector<16x128xbf16>
    %c0_10 = arith.constant 0 : index
    %c0_11 = arith.constant 0 : index
    %26 = vector.load %arg9[%c0_10, %c0_11] : memref<16x128xf32, #tpu.memory_space<vmem>>, vector<16x128xf32>
    %c0_12 = arith.constant 0 : index
    %c0_13 = arith.constant 0 : index
    %27 = vector.load %arg7[%c0_12, %c0_13] : memref<128x128xbf16, #tpu.memory_space<vmem>>, vector<128x128xbf16>
    %cst_14 = arith.constant dense<0.000000e+00> : vector<16x128xf32>
    %28 = tpu.matmul %25, %27, %cst_14 {dimension_numbers = #tpu.dot_dimension_numbers<[1], [0], [0], [1], [0, 0, 1, 1], [], []>} : vector<16x128xbf16>, vector<128x128xbf16>, vector<16x128xf32> -> vector<16x128xf32>
    %29 = arith.addf %26, %28 : vector<16x128xf32>
    %c0_15 = arith.constant 0 : index
    %c0_16 = arith.constant 0 : index
    %30 = vector.load %arg9[%c0_15, %c0_16] : memref<16x128xf32, #tpu.memory_space<vmem>>, vector<16x128xf32>
    tpu.vector_store %arg9[%c0_15, %c0_16], %29 {strides = array<i32>} : memref<16x128xf32, #tpu.memory_space<vmem>>, vector<16x128xf32>,
    return
  }
  func.func @transform_0(%arg0: i32, %arg1: i32) -> (i32, i32) {
    %c0_i32 = arith.constant 0 : i32
    %c0_i32_0 = arith.constant 0 : i32
    return %arg0, %c0_i32 : i32, i32
  }
  func.func @transform_1(%arg0: i32, %arg1: i32) -> (i32, i32) {
    %c0_i32 = arith.constant 0 : i32
    %c0_i32_0 = arith.constant 0 : i32
    %c0_i32_1 = arith.constant 0 : i32
    return %c0_i32, %c0_i32_0 : i32, i32
  }
  func.func @transform_2(%arg0: i32, %arg1: i32) -> (i32, i32) {
    %c0_i32 = arith.constant 0 : i32
    %c0_i32_0 = arith.constant 0 : i32
    %c0_i32_1 = arith.constant 0 : i32
    return %c0_i32, %c0_i32_0 : i32, i32
  }
  func.func @transform_3(%arg0: i32, %arg1: i32) -> (i32, i32) {
    %c0_i32 = arith.constant 0 : i32
    %c0_i32_0 = arith.constant 0 : i32
    return %c0_i32, %arg1 : i32, i32
  }
  func.func @transform_4(%arg0: i32, %arg1: i32) -> (i32, i32) {
    %c0_i32 = arith.constant 0 : i32
    %c0_i32_0 = arith.constant 0 : i32
    return %c0_i32, %arg1 : i32, i32
  }
  func.func @transform_5(%arg0: i32, %arg1: i32) -> (i32, i32) {
    %c0_i32 = arith.constant 0 : i32
    %c0_i32_0 = arith.constant 0 : i32
    return %arg1, %c0_i32 : i32, i32
  }
  func.func @transform_6(%arg0: i32, %arg1: i32) -> (i32, i32) {
    %c0_i32 = arith.constant 0 : i32
    %c0_i32_0 = arith.constant 0 : i32
    %c0_i32_1 = arith.constant 0 : i32
    return %c0_i32, %c0_i32_0 : i32, i32
  }
  func.func @transform_7(%arg0: i32, %arg1: i32) -> (i32, i32) {
    %c0_i32 = arith.constant 0 : i32
    %c0_i32_0 = arith.constant 0 : i32
    return %arg0, %c0_i32 : i32, i32
  }
}

module attributes {stable_mosaic.version = 11 : i64} {
  func.func @_ffn_kernel(%arg0: i32, %arg1: i32, %arg2: memref<16x128xf32, #tpu.memory_space<vmem>>, %arg3: memref<1x128xf32, #tpu.memory_space<vmem>>, %arg4: memref<1x128xf32, #tpu.memory_space<vmem>>, %arg5: memref<128x256xbf16, #tpu.memory_space<vmem>>, %arg6: memref<1x256xf32, #tpu.memory_space<vmem>>, %arg7: memref<128x128xbf16, #tpu.memory_space<vmem>>, %arg8: memref<1x128xf32, #tpu.memory_space<vmem>>, %arg9: memref<16x128xf32, #tpu.memory_space<vmem>>, %arg10: memref<16x128xbf16, #tpu.memory_space<vmem>>) attributes {dimension_semantics = [#tpu.dimension_semantics<parallel>, #tpu.dimension_semantics<arbitrary>], iteration_bounds = array<i64: 1, 1>, scalar_prefetch = 0 : i64, scratch_operands = 1 : i64, tpu.core_type = #tpu.core_type<tc>, window_params = [{transform_indices = @transform_0, window_bounds = array<i64: 16, 128>}, {pipeline_mode = #tpu.pipeline_mode<synchronous>, transform_indices = @transform_1, window_bounds = array<i64: 1, 128>}, {pipeline_mode = #tpu.pipeline_mode<synchronous>, transform_indices = @transform_2, window_bounds = array<i64: 1, 128>}, {transform_indices = @transform_3, window_bounds = array<i64: 128, 256>}, {transform_indices = @transform_4, window_bounds = array<i64: 1, 256>}, {transform_indices = @transform_5, window_bounds = array<i64: 128, 128>}, {pipeline_mode = #tpu.pipeline_mode<synchronous>, transform_indices = @transform_6, window_bounds = array<i64: 1, 128>}, {transform_indices = @transform_7, window_bounds = array<i64: 16, 128>}]} {
    %c0_i32 = arith.constant 0 : i32
    %0 = arith.cmpi eq, %arg1, %c0_i32 : i32
    %1 = arith.extui %0 : i1 to i32
    %c0_i32_0 = arith.constant 0 : i32
    %2 = arith.cmpi ne, %1, %c0_i32_0 : i32
    scf.if %2 {
      %c0_17 = arith.constant 0 : index
      %c0_18 = arith.constant 0 : index
      %31 = vector.load %arg2[%c0_17, %c0_18] : memref<16x128xf32, #tpu.memory_space<vmem>>, vector<16x128xf32>
      %cst_19 = arith.constant dense<0.000000e+00> : vector<16xf32>
      %32 = vector.multi_reduction <add>, %31, %cst_19 [1] : vector<16x128xf32> to vector<16xf32>
      %33 = vector.shape_cast %32 : vector<16xf32> to vector<16x1xf32>
      %cst_20 = arith.constant 3.125000e-02 : f32
      %34 = vector.broadcast %cst_20 : f32 to vector<16x1xf32>
      %35 = arith.mulf %33, %34 : vector<16x1xf32>
      %36 = vector.broadcast %35 : vector<16x1xf32> to vector<16x128xf32>
      %37 = arith.subf %31, %36 : vector<16x128xf32>
      %38 = tpu.iota {dimensions = array<i32: 1>} : vector<16x128xi32>
      %c32_i32 = arith.constant 32 : i32
      %39 = vector.broadcast %c32_i32 : i32 to vector<16x128xi32>
      %40 = arith.cmpi slt, %38, %39 : vector<16x128xi32>
      %cst_21 = arith.constant 0.000000e+00 : f32
      %41 = vector.broadcast %cst_21 : f32 to vector<16x128xf32>
      %42 = arith.select %40, %37, %41 : vector<16x128xi1>, vector<16x128xf32>
      %43 = arith.mulf %42, %42 : vector<16x128xf32>
      %cst_22 = arith.constant dense<0.000000e+00> : vector<16xf32>
      %44 = vector.multi_reduction <add>, %43, %cst_22 [1] : vector<16x128xf32> to vector<16xf32>
      %45 = vector.shape_cast %44 : vector<16xf32> to vector<16x1xf32>
      %cst_23 = arith.constant 3.125000e-02 : f32
      %46 = vector.broadcast %cst_23 : f32 to vector<16x1xf32>
      %47 = arith.mulf %45, %46 : vector<16x1xf32>
      %cst_24 = arith.constant 9.99999974E-6 : f32
      %48 = vector.broadcast %cst_24 : f32 to vector<16x1xf32>
      %49 = arith.addf %47, %48 : vector<16x1xf32>
      %50 = math.rsqrt %49 : vector<16x1xf32>
      %51 = vector.broadcast %50 : vector<16x1xf32> to vector<16x128xf32>
      %52 = arith.mulf %42, %51 : vector<16x128xf32>
      %c0_25 = arith.constant 0 : index
      %c0_26 = arith.constant 0 : index
      %53 = vector.load %arg3[%c0_25, %c0_26] : memref<1x128xf32, #tpu.memory_space<vmem>>, vector<1x128xf32>
      %54 = vector.broadcast %53 : vector<1x128xf32> to vector<16x128xf32>
      %55 = arith.mulf %52, %54 : vector<16x128xf32>
      %c0_27 = arith.constant 0 : index
      %c0_28 = arith.constant 0 : index
      %56 = vector.load %arg4[%c0_27, %c0_28] : memref<1x128xf32, #tpu.memory_space<vmem>>, vector<1x128xf32>
      %57 = vector.broadcast %56 : vector<1x128xf32> to vector<16x128xf32>
      %58 = arith.addf %55, %57 : vector<16x128xf32>
      %59 = arith.truncf %58 : vector<16x128xf32> to vector<16x128xbf16>
      %c0_29 = arith.constant 0 : index
      %c0_30 = arith.constant 0 : index
      %60 = vector.load %arg10[%c0_29, %c0_30] : memref<16x128xbf16, #tpu.memory_space<vmem>>, vector<16x128xbf16>
      tpu.vector_store %arg10[%c0_29, %c0_30], %59 {strides = array<i32>} : memref<16x128xbf16, #tpu.memory_space<vmem>>, vector<16x128xbf16>,
      %c0_31 = arith.constant 0 : index
      %c0_32 = arith.constant 0 : index
      %61 = vector.load %arg8[%c0_31, %c0_32] : memref<1x128xf32, #tpu.memory_space<vmem>>, vector<1x128xf32>
      %62 = vector.broadcast %61 : vector<1x128xf32> to vector<16x128xf32>
      %63 = arith.addf %31, %62 : vector<16x128xf32>
      %c0_33 = arith.constant 0 : index
      %c0_34 = arith.constant 0 : index
      %64 = vector.load %arg9[%c0_33, %c0_34] : memref<16x128xf32, #tpu.memory_space<vmem>>, vector<16x128xf32>
      tpu.vector_store %arg9[%c0_33, %c0_34], %63 {strides = array<i32>} : memref<16x128xf32, #tpu.memory_space<vmem>>, vector<16x128xf32>,
    } else {
    }
    %c0 = arith.constant 0 : index
    %c0_1 = arith.constant 0 : index
    %3 = vector.load %arg10[%c0, %c0_1] : memref<16x128xbf16, #tpu.memory_space<vmem>>, vector<16x128xbf16>
    %c0_2 = arith.constant 0 : index
    %c0_3 = arith.constant 0 : index
    %4 = vector.load %arg5[%c0_2, %c0_3] : memref<128x256xbf16, #tpu.memory_space<vmem>>, vector<128x256xbf16>
    %cst = arith.constant dense<0.000000e+00> : vector<16x256xf32>
    %5 = tpu.matmul %3, %4, %cst {dimension_numbers = #tpu.dot_dimension_numbers<[1], [0], [0], [1], [0, 0, 1, 1], [], []>} : vector<16x128xbf16>, vector<128x256xbf16>, vector<16x256xf32> -> vector<16x256xf32>
    %c0_4 = arith.constant 0 : index
    %c0_5 = arith.constant 0 : index
    %6 = vector.load %arg6[%c0_4, %c0_5] : memref<1x256xf32, #tpu.memory_space<vmem>>, vector<1x256xf32>
    %7 = vector.broadcast %6 : vector<1x256xf32> to vector<16x256xf32>
    %8 = arith.addf %5, %7 : vector<16x256xf32>
    %9 = vector.extract_strided_slice %8 {offsets = [0, 0], sizes = [16, 128], strides = [1, 1]} : vector<16x256xf32> to vector<16x128xf32>
    %10 = vector.extract_strided_slice %8 {offsets = [0, 128], sizes = [16, 128], strides = [1, 1]} : vector<16x256xf32> to vector<16x128xf32>
    %11 = arith.negf %10 : vector<16x128xf32>
    %12 = math.exp %11 : vector<16x128xf32>
    %cst_6 = arith.constant 1.000000e+00 : f32
    %13 = vector.broadcast %cst_6 : f32 to vector<16x128xf32>
    %14 = arith.addf %13, %12 : vector<16x128xf32>
    %15 = arith.divf %13, %14 : vector<16x128xf32>
    %cst_7 = arith.constant 5.000000e-01 : f32
    %16 = vector.broadcast %cst_7 : f32 to vector<16x128xf32>
    %17 = arith.mulf %16, %9 : vector<16x128xf32>
    %cst_8 = arith.constant 0.707106769 : f32
    %18 = vector.broadcast %cst_8 : f32 to vector<16x128xf32>
    %19 = arith.mulf %9, %18 : vector<16x128xf32>
    %20 = math.erf %19 : vector<16x128xf32>
    %cst_9 = arith.constant 1.000000e+00 : f32
    %21 = vector.broadcast %cst_9 : f32 to vector<16x128xf32>
    %22 = arith.addf %21, %20 : vector<16x128xf32>
    %23 = arith.mulf %17, %22 : vector<16x128xf32>
    %24 = arith.mulf %23, %15 : vector<16x128xf32>
    %25 = arith.truncf %24 : vector<16x128xf32> to vector<16x128xbf16>
    %c0_10 = arith.constant 0 : index
    %c0_11 = arith.constant 0 : index
    %26 = vector.load %arg9[%c0_10, %c0_11] : memref<16x128xf32, #tpu.memory_space<vmem>>, vector<16x128xf32>
    %c0_12 = arith.constant 0 : index
    %c0_13 = arith.constant 0 : index
    %27 = vector.load %arg7[%c0_12, %c0_13] : memref<128x128xbf16, #tpu.memory_space<vmem>>, vector<128x128xbf16>
    %cst_14 = arith.constant dense<0.000000e+00> : vector<16x128xf32>
    %28 = tpu.matmul %25, %27, %cst_14 {dimension_numbers = #tpu.dot_dimension_numbers<[1], [0], [0], [1], [0, 0, 1, 1], [], []>} : vector<16x128xbf16>, vector<128x128xbf16>, vector<16x128xf32> -> vector<16x128xf32>
    %29 = arith.addf %26, %28 : vector<16x128xf32>
    %c0_15 = arith.constant 0 : index
    %c0_16 = arith.constant 0 : index
    %30 = vector.load %arg9[%c0_15, %c0_16] : memref<16x128xf32, #tpu.memory_space<vmem>>, vector<16x128xf32>
    tpu.vector_store %arg9[%c0_15, %c0_16], %29 {strides = array<i32>} : memref<16x128xf32, #tpu.memory_space<vmem>>, vector<16x128xf32>,
    return
  }
  func.func @transform_0(%arg0: i32, %arg1: i32) -> (i32, i32) {
    %c0_i32 = arith.constant 0 : i32
    %c0_i32_0 = arith.constant 0 : i32
    return %arg0, %c0_i32 : i32, i32
  }
  func.func @transform_1(%arg0: i32, %arg1: i32) -> (i32, i32) {
    %c0_i32 = arith.constant 0 : i32
    %c0_i32_0 = arith.constant 0 : i32
    %c0_i32_1 = arith.constant 0 : i32
    return %c0_i32, %c0_i32_0 : i32, i32
  }
  func.func @transform_2(%arg0: i32, %arg1: i32) -> (i32, i32) {
    %c0_i32 = arith.constant 0 : i32
    %c0_i32_0 = arith.constant 0 : i32
    %c0_i32_1 = arith.constant 0 : i32
    return %c0_i32, %c0_i32_0 : i32, i32
  }
  func.func @transform_3(%arg0: i32, %arg1: i32) -> (i32, i32) {
    %c0_i32 = arith.constant 0 : i32
    %c0_i32_0 = arith.constant 0 : i32
    return %c0_i32, %arg1 : i32, i32
  }
  func.func @transform_4(%arg0: i32, %arg1: i32) -> (i32, i32) {
    %c0_i32 = arith.constant 0 : i32
    %c0_i32_0 = arith.constant 0 : i32
    return %c0_i32, %arg1 : i32, i32
  }
  func.func @transform_5(%arg0: i32, %arg1: i32) -> (i32, i32) {
    %c0_i32 = arith.constant 0 : i32
    %c0_i32_0 = arith.constant 0 : i32
    return %arg1, %c0_i32 : i32, i32
  }
  func.func @transform_6(%arg0: i32, %arg1: i32) -> (i32, i32) {
    %c0_i32 = arith.constant 0 : i32
    %c0_i32_0 = arith.constant 0 : i32
    %c0_i32_1 = arith.constant 0 : i32
    return %c0_i32, %c0_i32_0 : i32, i32
  }
  func.func @transform_7(%arg0: i32, %arg1: i32) -> (i32, i32) {
    %c0_i32 = arith.constant 0 : i32
    %c0_i32_0 = arith.constant 0 : i32
    return %arg0, %c0_i32 : i32, i32
  }
}

</mosaic_0001>

<llo_original>
// kernel: tpu_custom_call.1
$region0: #{tpu_custom_call.1}
  #allocation0 [shape = 'u32[]', space=smem, size = 0x4, offset = 0x4, fixed_abs, tag = 'smem constant byte address 0x4 - core index']
  #allocation1 [shape = 'u32[72,128]{1,0:T(1,128)}', space=vmem, size = 0x9000, scoped, tag = 'internal scratch']
  #allocation2 [shape = 'bf16[16,128]{1,0:T(8,128)(2,1)}', space=vmem, size = 0x1000, scoped, tag = 'scratch operand']
  %s0 = inlined_call_operand.hbm [shape: f32[16,128], index: 0, kind: input, shape index: {}]
  %s1 = inlined_call_operand.hbm [shape: f32[1,128], index: 1, kind: input, shape index: {}]
  %s2 = inlined_call_operand.vmem [shape: f32[1,128], index: 2, kind: input, shape index: {}]
  %s3 = inlined_call_operand.hbm [shape: bf16[128,256], index: 3, kind: input, shape index: {}]
  %s4 = inlined_call_operand.vmem [shape: f32[1,256], index: 4, kind: input, shape index: {}]
  %s5 = inlined_call_operand.hbm [shape: bf16[128,128], index: 5, kind: input, shape index: {}]
  %s6 = inlined_call_operand.vmem [shape: f32[1,128], index: 6, kind: input, shape index: {}]
  %s7 = inlined_call_operand.hbm [shape: f32[16,128], index: 7, kind: output, shape index: {}]
  %s8 = sld [smem:[#allocation0]]
  $region58: #{tpu_custom_call.1} parent=0
    _
  %s10 = ssub.s32 1, %s8
  %s11 = scalar_select 0, %s10, %s8
  $region1: #{tpu_custom_call.1} parent=0
    #allocation3 [shape = 'u8[8192]{0}', space=vmem, size = 0x2000, scoped, tag = 'input window, operand 0, single buffered']
    #allocation4 [shape = 's32[1]{0}', space=sflag, size = 0x4, scoped, tag = 'scoped memory for tpu_custom_call.1']
    #allocation5 [shape = 's32[1]{0}', space=sflag, size = 0x4, scoped, tag = 'scoped memory for tpu_custom_call.1']
    #allocation6 [shape = 'u8[512]{0}', space=vmem, size = 0x400, scoped, tag = 'input window, operand 1, single buffered']
    #allocation7 [shape = 's32[1]{0}', space=sflag, size = 0x4, scoped, tag = 'scoped memory for tpu_custom_call.1']
    #allocation8 [shape = 'u8[65536]{0}', space=vmem, size = 0x10000, scoped, tag = 'input window, operand 3, single buffered']
    #allocation9 [shape = 'u8[32768]{0}', space=vmem, size = 0x8000, scoped, tag = 'input window, operand 5, single buffered']
    #allocation10 [shape = 's32[1]{0}', space=sflag, size = 0x4, scoped, tag = 'scoped memory for tpu_custom_call.1']
    #allocation11 [shape = 'u8[8192]{0}', space=vmem, size = 0x2000, scoped, tag = 'output window, operand 0, single buffered']
    %12 = vsyncpa [#allocation4], 0
    %13 = vsyncpa [#allocation7], 0
    %14 = vsyncpa [#allocation10], 0
    %15 = vsyncpa [#allocation5], 0
    // Predicated region
    $region2: #{tpu_custom_call.1} parent=1 // pred_check
      _
    $region3: #{tpu_custom_call.1} parent=1 // pred_check_branch
      %17 = sbr.rel (0) target = $region5
    $region4: #{tpu_custom_call.1} parent=1 // pred_region
      %19 = vsyncadd [#allocation4], 0
      %s20 = sshll.u32 %s0, 4
      %s21 = int_to_ptr.hbm [resolvable:$true] %s20
      %s22 = sshll.u32 [#allocation3], 4
      %s23 = int_to_ptr.vmem [resolvable:$true] %s22
      %28 = dma.hbm_to_vmem [thread:$0]  %s21, 256, %s23, [#allocation4], 128, 128, 8
    $region5: #{tpu_custom_call.1} parent=1 // pred_fallthru
      _
    // Predicated region
    $region6: #{tpu_custom_call.1} parent=1 // pred_check
      _
    $region7: #{tpu_custom_call.1} parent=1 // pred_check_branch
      %30 = sbr.rel (0) target = $region9
    $region8: #{tpu_custom_call.1} parent=1 // pred_region
      %32 = vsyncadd [#allocation7], 0
      %s34 = sshll.u32 %s1, 4
      %s35 = int_to_ptr.hbm [resolvable:$true] %s34
      %s36 = sshll.u32 [#allocation6], 4
      %s37 = int_to_ptr.vmem [resolvable:$true] %s36
      %39 = dma.hbm_to_vmem [thread:$0]  %s35, 16, %s37, [#allocation7]
    $region9: #{tpu_custom_call.1} parent=1 // pred_fallthru
      _
    // Predicated region
    $region10: #{tpu_custom_call.1} parent=1 // pred_check
      _
    $region11: #{tpu_custom_call.1} parent=1 // pred_check_branch
      %41 = sbr.rel (0) target = $region13
    $region12: #{tpu_custom_call.1} parent=1 // pred_region
      _
    $region13: #{tpu_custom_call.1} parent=1 // pred_fallthru
      _
    // Predicated region
    $region14: #{tpu_custom_call.1} parent=1 // pred_check
      _
    $region15: #{tpu_custom_call.1} parent=1 // pred_check_branch
      %43 = sbr.rel (0) target = $region17
    $region16: #{tpu_custom_call.1} parent=1 // pred_region
      %45 = vsyncadd [#allocation7], 0
      %s46 = sshll.u32 %s3, 4
      %s47 = int_to_ptr.hbm [resolvable:$true] %s46
      %s48 = sshll.u32 [#allocation8], 4
      %s49 = int_to_ptr.vmem [resolvable:$true] %s48
      %54 = dma.hbm_to_vmem [thread:$0]  %s47, 2048, %s49, [#allocation7], 128, 128, 8
    $region17: #{tpu_custom_call.1} parent=1 // pred_fallthru
      _
    // Predicated region
    $region18: #{tpu_custom_call.1} parent=1 // pred_check
      _
    $region19: #{tpu_custom_call.1} parent=1 // pred_check_branch
      %56 = sbr.rel (0) target = $region21
    $region20: #{tpu_custom_call.1} parent=1 // pred_region
      _
    $region21: #{tpu_custom_call.1} parent=1 // pred_fallthru
      _
    // Predicated region
    $region22: #{tpu_custom_call.1} parent=1 // pred_check
      _
    $region23: #{tpu_custom_call.1} parent=1 // pred_check_branch
      %58 = sbr.rel (0) target = $region25
    $region24: #{tpu_custom_call.1} parent=1 // pred_region
      %60 = vsyncadd [#allocation10], 0
      %s61 = sshll.u32 %s5, 4
      %s62 = int_to_ptr.hbm [resolvable:$true] %s61
      %s63 = sshll.u32 [#allocation9], 4
      %s64 = int_to_ptr.vmem [resolvable:$true] %s63
      %69 = dma.hbm_to_vmem [thread:$0]  %s62, 1024, %s64, [#allocation10], 64, 64, 4
    $region25: #{tpu_custom_call.1} parent=1 // pred_fallthru
      _
    // Predicated region
    $region26: #{tpu_custom_call.1} parent=1 // pred_check
      _
    $region27: #{tpu_custom_call.1} parent=1 // pred_check_branch
      %71 = sbr.rel (0) target = $region29
    $region28: #{tpu_custom_call.1} parent=1 // pred_region
      _
    $region29: #{tpu_custom_call.1} parent=1 // pred_fallthru
      _
    // Predicated region
    $region30: #{tpu_custom_call.1} parent=1 // pred_check
      _
    $region31: #{tpu_custom_call.1} parent=1 // pred_check_branch
      %73 = sbr.rel (0) target = $region33
    $region32: #{tpu_custom_call.1} parent=1 // pred_region
      %75 = dma.done [#allocation4], 256
    $region33: #{tpu_custom_call.1} parent=1 // pred_fallthru
      _
    // Predicated region
    $region34: #{tpu_custom_call.1} parent=1 // pred_check
      _
    $region35: #{tpu_custom_call.1} parent=1 // pred_check_branch
      %77 = sbr.rel (0) target = $region37
    $region36: #{tpu_custom_call.1} parent=1 // pred_region
      %79 = dma.done [#allocation7], 16
    $region37: #{tpu_custom_call.1} parent=1 // pred_fallthru
      _
    // Predicated region
    $region38: #{tpu_custom_call.1} parent=1 // pred_check
      _
    $region39: #{tpu_custom_call.1} parent=1 // pred_check_branch
      %81 = sbr.rel (0) target = $region41
    $region40: #{tpu_custom_call.1} parent=1 // pred_region
      %83 = dma.done [#allocation7], 2048
    $region41: #{tpu_custom_call.1} parent=1 // pred_fallthru
      _
    // Predicated region
    $region42: #{tpu_custom_call.1} parent=1 // pred_check
      _
    $region43: #{tpu_custom_call.1} parent=1 // pred_check_branch
      %85 = sbr.rel (0) target = $region45
    $region44: #{tpu_custom_call.1} parent=1 // pred_region
      %87 = dma.done [#allocation10], 1024
    $region45: #{tpu_custom_call.1} parent=1 // pred_fallthru
      _
    %p88 = scmp.eq.s32.totalorder 0, 0
    // Predicated region
    $region46: #{tpu_custom_call.1} parent=1 // pred_check
      %p89 = pneg %p88
    $region47: #{tpu_custom_call.1} parent=1 // pred_check_branch
      %91 = sbr.rel (%p89) target = $region49
    $region48: #{tpu_custom_call.1} parent=1 // pred_region
      %v92 = vld [vmem:[#allocation3] sm:$0xff]
      %v93 = vld [vmem:[#allocation3 + $0x8] sm:$0xff]
      %94 = vadd.xlane.f32.xlu0 %v92
      %v95 = vpop.xlane.xlu0 %94
      %96 = vadd.xlane.f32.xlu0 %v93
      %v97 = vpop.xlane.xlu0 %96
      %v98 = vmul.f32 %v95, 0.03125
      %v99 = vmul.f32 %v97, 0.03125
      %v100 = vsub.f32 %v92, %v98
      %v101 = vsub.f32 %v93, %v99
      %v102 = vlaneseq
      %v103 = vand.u32 %v102, 127
      %vm104 = vcmp.lt.s32.totalorder %v103, 32
      %v105 = vsel %vm104, %v100, 0.0
      %v106 = vsel %vm104, %v101, 0.0
      %v107 = vmul.f32 %v105, %v105
      %v108 = vmul.f32 %v106, %v106
      %109 = vadd.xlane.f32.xlu0 %v107
      %v110 = vpop.xlane.xlu0 %109
      %111 = vadd.xlane.f32.xlu0 %v108
      %v112 = vpop.xlane.xlu0 %111
      %v113 = vmul.f32 %v110, 0.03125
      %v114 = vmul.f32 %v112, 0.03125
      %v115 = vadd.f32 %v113, 1e-05
      %v116 = vadd.f32 %v114, 1e-05
      %v117 = vrsqrt.pop %v115
      %v118 = vmul.f32 %v117, %v115
      %v119 = vmul.f32 %v118, %v117
      %v120 = vmul.f32 0.5, %v119
      %v121 = vsub.f32 1.5, %v120
      %v122 = vmul.f32 %v117, %v121
      %vm123 = vweird.f32 %v115
      %vm124 = vweird.f32 %v117
      %vm125 = vmor %vm123, %vm124
      %v126 = vsel %vm125, %v117, %v122
      %v127 = vrsqrt.pop %v116
      %v128 = vmul.f32 %v127, %v116
      %v129 = vmul.f32 %v128, %v127
      %v130 = vmul.f32 0.5, %v129
      %v131 = vsub.f32 1.5, %v130
      %v132 = vmul.f32 %v127, %v131
      %vm133 = vweird.f32 %v116
      %vm134 = vweird.f32 %v127
      %vm135 = vmor %vm133, %vm134
      %v136 = vsel %vm135, %v127, %v132
      %v137 = vmul.f32 %v105, %v126
      %v138 = vmul.f32 %v106, %v136
      %v139 = vld [vmem:[#allocation6] sm:$0x1]
      %v141 = vperm.slane %v139, 0
      %v143 = vmul.f32 %v137, %v141
      %v144 = vmul.f32 %v138, %v141
      %v145 = vld [vmem:[%s2] sm:$0x1]
      %v147 = vperm.slane %v145, 0
      %v149 = vadd.f32 %v143, %v147
      %v150 = vadd.f32 %v144, %v147
      %v151 = vpack.c.bf16 %v149, %v149
      %v152 = vpack.c.bf16 %v150, %v150
      %153 = vst [vmem:[#allocation2] sm:$0xf] %v151
      %154 = vst [vmem:[#allocation2 + $0x4] sm:$0xf] %v152
      %v155 = vld [vmem:[%s6] sm:$0x1]
      %v157 = vperm.slane %v155, 0
      %v159 = vadd.f32 %v92, %v157
      %v160 = vadd.f32 %v93, %v157
      %161 = vst [vmem:[#allocation11] sm:$0xff] %v159
      %162 = vst [vmem:[#allocation11 + $0x8] sm:$0xff] %v160
    $region49: #{tpu_custom_call.1} parent=1 // pred_fallthru
      _
    %v163 = vld [vmem:[#allocation2] sm:$0xf]
    %v164 = vld [vmem:[#allocation2 + $0x4] sm:$0xf]
    %v165 = vld [vmem:[#allocation8] sm:$0xff]
    %v166 = vld [vmem:[#allocation8 + $0x8] sm:$0xff]
    %v167 = vld [vmem:[#allocation8 + $0x10] sm:$0xff]
    %v168 = vld [vmem:[#allocation8 + $0x18] sm:$0xff]
    %v169 = vld [vmem:[#allocation8 + $0x20] sm:$0xff]
    %v170 = vld [vmem:[#allocation8 + $0x28] sm:$0xff]
    %v171 = vld [vmem:[#allocation8 + $0x30] sm:$0xff]
    %v172 = vld [vmem:[#allocation8 + $0x38] sm:$0xff]
    %v173 = vld [vmem:[#allocation8 + $0x40] sm:$0xff]
    %v174 = vld [vmem:[#allocation8 + $0x48] sm:$0xff]
    %v175 = vld [vmem:[#allocation8 + $0x50] sm:$0xff]
    %v176 = vld [vmem:[#allocation8 + $0x58] sm:$0xff]
    %v177 = vld [vmem:[#allocation8 + $0x60] sm:$0xff]
    %v178 = vld [vmem:[#allocation8 + $0x68] sm:$0xff]
    %v179 = vld [vmem:[#allocation8 + $0x70] sm:$0xff]
    %v180 = vld [vmem:[#allocation8 + $0x78] sm:$0xff]
    %v181 = vld [vmem:[%s4] sm:$0x3]
    %v183 = vperm.slane %v181, 0
    %v184 = vperm.slane %v181, 1
    %v189 = vunpack.c.l.b16 %v163
    %v190 = vunpack.c.l.b16 %v164
    %v191 = vpack.c.b16 %v190, %v189
    %v209 = vunpack.c.l.b16 %v165
    %v210 = vunpack.c.h.b16 %v165
    %v211 = vunpack.c.l.b16 %v166
    %v212 = vunpack.c.h.b16 %v166
    %v213 = vunpack.c.l.b16 %v167
    %v214 = vunpack.c.h.b16 %v167
    %v215 = vunpack.c.l.b16 %v168
    %v216 = vunpack.c.h.b16 %v168
    %v217 = vunpack.c.l.b16 %v169
    %v218 = vunpack.c.h.b16 %v169
    %v219 = vunpack.c.l.b16 %v170
    %v220 = vunpack.c.h.b16 %v170
    %v221 = vunpack.c.l.b16 %v171
    %v222 = vunpack.c.h.b16 %v171
    %v223 = vunpack.c.l.b16 %v172
    %v224 = vunpack.c.h.b16 %v172
    %v225 = vunpack.c.l.b16 %v173
    %v226 = vunpack.c.h.b16 %v173
    %v227 = vunpack.c.l.b16 %v174
    %v228 = vunpack.c.h.b16 %v174
    %v229 = vunpack.c.l.b16 %v175
    %v230 = vunpack.c.h.b16 %v175
    %v231 = vunpack.c.l.b16 %v176
    %v232 = vunpack.c.h.b16 %v176
    %v233 = vunpack.c.l.b16 %v177
    %v234 = vunpack.c.h.b16 %v177
    %v235 = vunpack.c.l.b16 %v178
    %v236 = vunpack.c.h.b16 %v178
    %v237 = vunpack.c.l.b16 %v179
    %v238 = vunpack.c.h.b16 %v179
    %v239 = vunpack.c.l.b16 %v180
    %v240 = vunpack.c.h.b16 %v180
    %v241 = vpack.c.b16 %v211, %v209
    %v242 = vpack.c.b16 %v212, %v210
    %v243 = vpack.c.b16 %v215, %v213
    %v244 = vpack.c.b16 %v216, %v214
    %v245 = vpack.c.b16 %v219, %v217
    %v246 = vpack.c.b16 %v220, %v218
    %v247 = vpack.c.b16 %v223, %v221
    %v248 = vpack.c.b16 %v224, %v222
    %v249 = vpack.c.b16 %v227, %v225
    %v250 = vpack.c.b16 %v228, %v226
    %v251 = vpack.c.b16 %v231, %v229
    %v252 = vpack.c.b16 %v232, %v230
    %v253 = vpack.c.b16 %v235, %v233
    %v254 = vpack.c.b16 %v236, %v234
    %v255 = vpack.c.b16 %v239, %v237
    %v256 = vpack.c.b16 %v240, %v238
    %273 = vmatpush.bf16.msra.mxu0 %v255
    %274 = vmatpush.bf16.msra.mxu0 %v253
    %275 = vmatpush.bf16.msra.mxu0 %v251
    %276 = vmatpush.bf16.msra.mxu0 %v249
    %277 = vmatpush.bf16.msra.mxu0 %v247
    %278 = vmatpush.bf16.msra.mxu0 %v245
    %279 = vmatpush.bf16.msra.mxu0 %v243
    %280 = vmatpush.bf16.msra.mxu0 %v241
    %281 = vmatmul.bf16.gmra.mxu0 %v191
    %v282 = vpop.f32.mrf.mxu0
    %v283 = vadd.f32 %v183, %v282
    %v284 = vpop.f32.mrf.mxu0
    %v285 = vadd.f32 %v183, %v284
    %286 = vdwg.mxu0
    %287 = vmatpush.bf16.msra.mxu0 %v256
    %288 = vmatpush.bf16.msra.mxu0 %v254
    %289 = vmatpush.bf16.msra.mxu0 %v252
    %290 = vmatpush.bf16.msra.mxu0 %v250
    %291 = vmatpush.bf16.msra.mxu0 %v248
    %292 = vmatpush.bf16.msra.mxu0 %v246
    %293 = vmatpush.bf16.msra.mxu0 %v244
    %294 = vmatpush.bf16.msra.mxu0 %v242
    %295 = vmatmul.bf16.gmra.mxu0 %v191
    %v296 = vpop.f32.mrf.mxu0
    %v297 = vadd.f32 %v184, %v296
    %v298 = vpop.f32.mrf.mxu0
    %v299 = vadd.f32 %v184, %v298
    %300 = vdwg.mxu0
    %v301 = vxor.u32 %v297, 2147483648
    %v302 = vxor.u32 %v299, 2147483648
    %v303 = vmul.f32 %v301, 1.442695
    %v304 = vpow.pop %v303
    %v305 = vmul.f32 %v302, 1.442695
    %v306 = vpow.pop %v305
    %v307 = vadd.f32 %v304, 1.0
    %v308 = vadd.f32 %v306, 1.0
    %v309 = vrcp.pop %v307
    %v310 = vmul.f32 %v307, %v309
    %v311 = vsub.f32 1.0, %v310
    %v312 = vmul.f32 %v309, %v311
    %v313 = vadd.f32 %v309, %v312
    %vm314 = vweird.f32 %v307
    %vm315 = vweird.f32 %v309
    %vm316 = vmor %vm314, %vm315
    %v317 = vsel %vm316, %v309, %v313
    %v318 = vand.u32 2147483647, %v307
    %vm319 = vcmp.eq.f32.partialorder %v318, 8.507059e+37
    %v320 = vand.u32 %v307, 2147483648
    %v321 = vor.u32 1.1754944e-38, %v320
    %v322 = vsel %vm319, %v321, %v317
    %v323 = vmul.f32 1.0, %v322
    %v324 = vrcp.pop %v308
    %v325 = vmul.f32 %v308, %v324
    %v326 = vsub.f32 1.0, %v325
    %v327 = vmul.f32 %v324, %v326
    %v328 = vadd.f32 %v324, %v327
    %vm329 = vweird.f32 %v308
    %vm330 = vweird.f32 %v324
    %vm331 = vmor %vm329, %vm330
    %v332 = vsel %vm331, %v324, %v328
    %v333 = vand.u32 2147483647, %v308
    %vm334 = vcmp.eq.f32.partialorder %v333, 8.507059e+37
    %v335 = vand.u32 %v308, 2147483648
    %v336 = vor.u32 1.1754944e-38, %v335
    %v337 = vsel %vm334, %v336, %v332
    %v338 = vmul.f32 1.0, %v337
    %v339 = vmul.f32 %v283, 0.5
    %v340 = vmul.f32 %v285, 0.5
    %v341 = vmul.f32 %v283, 0.70710677
    %v342 = vmul.f32 %v285, 0.70710677
    %v343 = vmul.f32 %v341, %v341
    %v344 = vmin.f32 16.0, %v343
    %v345 = vmul.f32 %v344, 2.1237322e-06
    %v346 = vadd.f32 %v345, 0.00028619796
    %v347 = vmul.f32 %v344, %v346
    %v348 = vadd.f32 %v347, 0.0036580483
    %v349 = vmul.f32 %v344, %v348
    %v350 = vadd.f32 %v349, 0.05243302
    %v351 = vmul.f32 %v344, %v350
    %v352 = vadd.f32 %v351, 0.18741608
    %v353 = vmul.f32 %v344, %v352
    %v354 = vadd.f32 %v353, 1.1283791
    %v355 = vmul.f32 %v341, %v354
    %v356 = vmul.f32 %v344, 3.8918573e-05
    %v357 = vadd.f32 %v356, 0.001143296
    %v358 = vmul.f32 %v344, %v357
    %v359 = vadd.f32 %v358, 0.014752088
    %v360 = vmul.f32 %v344, %v359
    %v361 = vadd.f32 %v360, 0.112945676
    %v362 = vmul.f32 %v344, %v361
    %v363 = vadd.f32 %v362, 0.4994258
    %v364 = vmul.f32 %v344, %v363
    %v365 = vadd.f32 %v364, 1.0
    %v366 = vrcp.pop %v365
    %v367 = vmul.f32 %v365, %v366
    %v368 = vsub.f32 1.0, %v367
    %v369 = vmul.f32 %v366, %v368
    %v370 = vadd.f32 %v366, %v369
    %vm371 = vweird.f32 %v365
    %vm372 = vweird.f32 %v366
    %vm373 = vmor %vm371, %vm372
    %v374 = vsel %vm373, %v366, %v370
    %v375 = vand.u32 2147483647, %v365
    %vm376 = vcmp.eq.f32.partialorder %v375, 8.507059e+37
    %v377 = vand.u32 %v365, 2147483648
    %v378 = vor.u32 1.1754944e-38, %v377
    %v379 = vsel %vm376, %v378, %v374
    %v380 = vmul.f32 %v355, %v379
    %v381 = vmin.f32 %v380, 1.0
    %v382 = vmax.f32 %v381, -1.0
    %v383 = vmul.f32 %v342, %v342
    %v384 = vmin.f32 16.0, %v383
    %v385 = vmul.f32 %v384, 2.1237322e-06
    %v386 = vadd.f32 %v385, 0.00028619796
    %v387 = vmul.f32 %v384, %v386
    %v388 = vadd.f32 %v387, 0.0036580483
    %v389 = vmul.f32 %v384, %v388
    %v390 = vadd.f32 %v389, 0.05243302
    %v391 = vmul.f32 %v384, %v390
    %v392 = vadd.f32 %v391, 0.18741608
    %v393 = vmul.f32 %v384, %v392
    %v394 = vadd.f32 %v393, 1.1283791
    %v395 = vmul.f32 %v342, %v394
    %v396 = vmul.f32 %v384, 3.8918573e-05
    %v397 = vadd.f32 %v396, 0.001143296
    %v398 = vmul.f32 %v384, %v397
    %v399 = vadd.f32 %v398, 0.014752088
    %v400 = vmul.f32 %v384, %v399
    %v401 = vadd.f32 %v400, 0.112945676
    %v402 = vmul.f32 %v384, %v401
    %v403 = vadd.f32 %v402, 0.4994258
    %v404 = vmul.f32 %v384, %v403
    %v405 = vadd.f32 %v404, 1.0
    %v406 = vrcp.pop %v405
    %v407 = vmul.f32 %v405, %v406
    %v408 = vsub.f32 1.0, %v407
    %v409 = vmul.f32 %v406, %v408
    %v410 = vadd.f32 %v406, %v409
    %vm411 = vweird.f32 %v405
    %vm412 = vweird.f32 %v406
    %vm413 = vmor %vm411, %vm412
    %v414 = vsel %vm413, %v406, %v410
    %v415 = vand.u32 2147483647, %v405
    %vm416 = vcmp.eq.f32.partialorder %v415, 8.507059e+37
    %v417 = vand.u32 %v405, 2147483648
    %v418 = vor.u32 1.1754944e-38, %v417
    %v419 = vsel %vm416, %v418, %v414
    %v420 = vmul.f32 %v395, %v419
    %v421 = vmin.f32 %v420, 1.0
    %v422 = vmax.f32 %v421, -1.0
    %v423 = vadd.f32 %v382, 1.0
    %v424 = vadd.f32 %v422, 1.0
    %v425 = vmul.f32 %v339, %v423
    %v426 = vmul.f32 %v340, %v424
    %v427 = vmul.f32 %v425, %v323
    %v428 = vmul.f32 %v426, %v338
    %v429 = vpack.c.bf16 %v428, %v427
    %v430 = vld [vmem:[#allocation11] sm:$0xff]
    %v431 = vld [vmem:[#allocation11 + $0x8] sm:$0xff]
    %v432 = vld [vmem:[#allocation9] sm:$0xf]
    %v433 = vld [vmem:[#allocation9 + $0x4] sm:$0xf]
    %v434 = vld [vmem:[#allocation9 + $0x8] sm:$0xf]
    %v435 = vld [vmem:[#allocation9 + $0xc] sm:$0xf]
    %v436 = vld [vmem:[#allocation9 + $0x10] sm:$0xf]
    %v437 = vld [vmem:[#allocation9 + $0x14] sm:$0xf]
    %v438 = vld [vmem:[#allocation9 + $0x18] sm:$0xf]
    %v439 = vld [vmem:[#allocation9 + $0x1c] sm:$0xf]
    %v440 = vld [vmem:[#allocation9 + $0x20] sm:$0xf]
    %v441 = vld [vmem:[#allocation9 + $0x24] sm:$0xf]
    %v442 = vld [vmem:[#allocation9 + $0x28] sm:$0xf]
    %v443 = vld [vmem:[#allocation9 + $0x2c] sm:$0xf]
    %v444 = vld [vmem:[#allocation9 + $0x30] sm:$0xf]
    %v445 = vld [vmem:[#allocation9 + $0x34] sm:$0xf]
    %v446 = vld [vmem:[#allocation9 + $0x38] sm:$0xf]
    %v447 = vld [vmem:[#allocation9 + $0x3c] sm:$0xf]
    %v464 = vunpack.c.l.b16 %v432
    %v465 = vunpack.c.l.b16 %v433
    %v466 = vunpack.c.l.b16 %v434
    %v467 = vunpack.c.l.b16 %v435
    %v468 = vunpack.c.l.b16 %v436
    %v469 = vunpack.c.l.b16 %v437
    %v470 = vunpack.c.l.b16 %v438
    %v471 = vunpack.c.l.b16 %v439
    %v472 = vunpack.c.l.b16 %v440
    %v473 = vunpack.c.l.b16 %v441
    %v474 = vunpack.c.l.b16 %v442
    %v475 = vunpack.c.l.b16 %v443
    %v476 = vunpack.c.l.b16 %v444
    %v477 = vunpack.c.l.b16 %v445
    %v478 = vunpack.c.l.b16 %v446
    %v479 = vunpack.c.l.b16 %v447
    %v480 = vpack.c.b16 %v465, %v464
    %v481 = vpack.c.b16 %v467, %v466
    %v482 = vpack.c.b16 %v469, %v468
    %v483 = vpack.c.b16 %v471, %v470
    %v484 = vpack.c.b16 %v473, %v472
    %v485 = vpack.c.b16 %v475, %v474
    %v486 = vpack.c.b16 %v477, %v476
    %v487 = vpack.c.b16 %v479, %v478
    %496 = vmatpush.bf16.msra.mxu0 %v487
    %497 = vmatpush.bf16.msra.mxu0 %v486
    %498 = vmatpush.bf16.msra.mxu0 %v485
    %499 = vmatpush.bf16.msra.mxu0 %v484
    %500 = vmatpush.bf16.msra.mxu0 %v483
    %501 = vmatpush.bf16.msra.mxu0 %v482
    %502 = vmatpush.bf16.msra.mxu0 %v481
    %503 = vmatpush.bf16.msra.mxu0 %v480
    %504 = vmatmul.bf16.gmra.mxu0 %v429
    %v505 = vpop.f32.mrf.mxu0
    %v506 = vadd.f32 0.0, %v505
    %v507 = vpop.f32.mrf.mxu0
    %v508 = vadd.f32 0.0, %v507
    %509 = vdwg.mxu0
    %v510 = vadd.f32 %v430, %v506
    %v511 = vadd.f32 %v431, %v508
    %512 = vst [vmem:[#allocation11] sm:$0xff] %v510
    %513 = vst [vmem:[#allocation11 + $0x8] sm:$0xff] %v511
    // Predicated region
    $region50: #{tpu_custom_call.1} parent=1 // pred_check
      _
    $region51: #{tpu_custom_call.1} parent=1 // pred_check_branch
      %515 = sbr.rel (0) target = $region53
    $region52: #{tpu_custom_call.1} parent=1 // pred_region
      %517 = vsyncadd [#allocation5], 0
      %s518 = sshll.u32 [#allocation11], 4
      %s519 = int_to_ptr.vmem [resolvable:$true] %s518
      %s520 = sshll.u32 %s7, 4
      %s521 = int_to_ptr.hbm [resolvable:$true] %s520
      %526 = dma.vmem_to_hbm [thread:$0]  %s519, 256, %s521, [#allocation5], 128, 128, 8
    $region53: #{tpu_custom_call.1} parent=1 // pred_fallthru
      _
    // Predicated region
    $region54: #{tpu_custom_call.1} parent=1 // pred_check
      _
    $region55: #{tpu_custom_call.1} parent=1 // pred_check_branch
      %528 = sbr.rel (0) target = $region57
    $region56: #{tpu_custom_call.1} parent=1 // pred_region
      %530 = dma.done [#allocation5], 256
    $region57: #{tpu_custom_call.1} parent=1 // pred_fallthru
      _
    %531 = vsyncpa [#allocation4], 1
    %532 = vsyncpa [#allocation7], 1
    %533 = vsyncpa [#allocation10], 1
    %534 = vsyncpa [#allocation5], 1

// kernel: tpu_custom_call.1
$region0: #{tpu_custom_call.1}
  #allocation0 [shape = 'u32[]', space=smem, size = 0x4, offset = 0x4, fixed_abs, tag = 'smem constant byte address 0x4 - core index']
  #allocation1 [shape = 'u32[72,128]{1,0:T(1,128)}', space=vmem, size = 0x9000, scoped, tag = 'internal scratch']
  #allocation2 [shape = 'bf16[16,128]{1,0:T(8,128)(2,1)}', space=vmem, size = 0x1000, scoped, tag = 'scratch operand']
  %s0 = inlined_call_operand.hbm [shape: f32[16,128], index: 0, kind: input, shape index: {}]
  %s1 = inlined_call_operand.hbm [shape: f32[1,128], index: 1, kind: input, shape index: {}]
  %s2 = inlined_call_operand.vmem [shape: f32[1,128], index: 2, kind: input, shape index: {}]
  %s3 = inlined_call_operand.hbm [shape: bf16[128,256], index: 3, kind: input, shape index: {}]
  %s4 = inlined_call_operand.vmem [shape: f32[1,256], index: 4, kind: input, shape index: {}]
  %s5 = inlined_call_operand.hbm [shape: bf16[128,128], index: 5, kind: input, shape index: {}]
  %s6 = inlined_call_operand.vmem [shape: f32[1,128], index: 6, kind: input, shape index: {}]
  %s7 = inlined_call_operand.hbm [shape: f32[16,128], index: 7, kind: output, shape index: {}]
  %s8 = sld [smem:[#allocation0]]
  $region58: #{tpu_custom_call.1} parent=0
    _
  %s10 = ssub.s32 1, %s8
  %s11 = scalar_select 0, %s10, %s8
  $region1: #{tpu_custom_call.1} parent=0
    #allocation3 [shape = 'u8[8192]{0}', space=vmem, size = 0x2000, scoped, tag = 'input window, operand 0, single buffered']
    #allocation4 [shape = 's32[1]{0}', space=sflag, size = 0x4, scoped, tag = 'scoped memory for tpu_custom_call.1']
    #allocation5 [shape = 's32[1]{0}', space=sflag, size = 0x4, scoped, tag = 'scoped memory for tpu_custom_call.1']
    #allocation6 [shape = 'u8[512]{0}', space=vmem, size = 0x400, scoped, tag = 'input window, operand 1, single buffered']
    #allocation7 [shape = 's32[1]{0}', space=sflag, size = 0x4, scoped, tag = 'scoped memory for tpu_custom_call.1']
    #allocation8 [shape = 'u8[65536]{0}', space=vmem, size = 0x10000, scoped, tag = 'input window, operand 3, single buffered']
    #allocation9 [shape = 'u8[32768]{0}', space=vmem, size = 0x8000, scoped, tag = 'input window, operand 5, single buffered']
    #allocation10 [shape = 's32[1]{0}', space=sflag, size = 0x4, scoped, tag = 'scoped memory for tpu_custom_call.1']
    #allocation11 [shape = 'u8[8192]{0}', space=vmem, size = 0x2000, scoped, tag = 'output window, operand 0, single buffered']
    %12 = vsyncpa [#allocation4], 0
    %13 = vsyncpa [#allocation7], 0
    %14 = vsyncpa [#allocation10], 0
    %15 = vsyncpa [#allocation5], 0
    // Predicated region
    $region2: #{tpu_custom_call.1} parent=1 // pred_check
      _
    $region3: #{tpu_custom_call.1} parent=1 // pred_check_branch
      %17 = sbr.rel (0) target = $region5
    $region4: #{tpu_custom_call.1} parent=1 // pred_region
      %19 = vsyncadd [#allocation4], 0
      %s20 = sshll.u32 %s0, 4
      %s21 = int_to_ptr.hbm [resolvable:$true] %s20
      %s22 = sshll.u32 [#allocation3], 4
      %s23 = int_to_ptr.vmem [resolvable:$true] %s22
      %28 = dma.hbm_to_vmem [thread:$0]  %s21, 256, %s23, [#allocation4], 128, 128, 8
    $region5: #{tpu_custom_call.1} parent=1 // pred_fallthru
      _
    // Predicated region
    $region6: #{tpu_custom_call.1} parent=1 // pred_check
      _
    $region7: #{tpu_custom_call.1} parent=1 // pred_check_branch
      %30 = sbr.rel (0) target = $region9
    $region8: #{tpu_custom_call.1} parent=1 // pred_region
      %32 = vsyncadd [#allocation7], 0
      %s34 = sshll.u32 %s1, 4
      %s35 = int_to_ptr.hbm [resolvable:$true] %s34
      %s36 = sshll.u32 [#allocation6], 4
      %s37 = int_to_ptr.vmem [resolvable:$true] %s36
      %39 = dma.hbm_to_vmem [thread:$0]  %s35, 16, %s37, [#allocation7]
    $region9: #{tpu_custom_call.1} parent=1 // pred_fallthru
      _
    // Predicated region
    $region10: #{tpu_custom_call.1} parent=1 // pred_check
      _
    $region11: #{tpu_custom_call.1} parent=1 // pred_check_branch
      %41 = sbr.rel (0) target = $region13
    $region12: #{tpu_custom_call.1} parent=1 // pred_region
      _
    $region13: #{tpu_custom_call.1} parent=1 // pred_fallthru
      _
    // Predicated region
    $region14: #{tpu_custom_call.1} parent=1 // pred_check
      _
    $region15: #{tpu_custom_call.1} parent=1 // pred_check_branch
      %43 = sbr.rel (0) target = $region17
    $region16: #{tpu_custom_call.1} parent=1 // pred_region
      %45 = vsyncadd [#allocation7], 0
      %s46 = sshll.u32 %s3, 4
      %s47 = int_to_ptr.hbm [resolvable:$true] %s46
      %s48 = sshll.u32 [#allocation8], 4
      %s49 = int_to_ptr.vmem [resolvable:$true] %s48
      %54 = dma.hbm_to_vmem [thread:$0]  %s47, 2048, %s49, [#allocation7], 128, 128, 8
    $region17: #{tpu_custom_call.1} parent=1 // pred_fallthru
      _
    // Predicated region
    $region18: #{tpu_custom_call.1} parent=1 // pred_check
      _
    $region19: #{tpu_custom_call.1} parent=1 // pred_check_branch
      %56 = sbr.rel (0) target = $region21
    $region20: #{tpu_custom_call.1} parent=1 // pred_region
      _
    $region21: #{tpu_custom_call.1} parent=1 // pred_fallthru
      _
    // Predicated region
    $region22: #{tpu_custom_call.1} parent=1 // pred_check
      _
    $region23: #{tpu_custom_call.1} parent=1 // pred_check_branch
      %58 = sbr.rel (0) target = $region25
    $region24: #{tpu_custom_call.1} parent=1 // pred_region
      %60 = vsyncadd [#allocation10], 0
      %s61 = sshll.u32 %s5, 4
      %s62 = int_to_ptr.hbm [resolvable:$true] %s61
      %s63 = sshll.u32 [#allocation9], 4
      %s64 = int_to_ptr.vmem [resolvable:$true] %s63
      %69 = dma.hbm_to_vmem [thread:$0]  %s62, 1024, %s64, [#allocation10], 64, 64, 4
    $region25: #{tpu_custom_call.1} parent=1 // pred_fallthru
      _
    // Predicated region
    $region26: #{tpu_custom_call.1} parent=1 // pred_check
      _
    $region27: #{tpu_custom_call.1} parent=1 // pred_check_branch
      %71 = sbr.rel (0) target = $region29
    $region28: #{tpu_custom_call.1} parent=1 // pred_region
      _
    $region29: #{tpu_custom_call.1} parent=1 // pred_fallthru
      _
    // Predicated region
    $region30: #{tpu_custom_call.1} parent=1 // pred_check
      _
    $region31: #{tpu_custom_call.1} parent=1 // pred_check_branch
      %73 = sbr.rel (0) target = $region33
    $region32: #{tpu_custom_call.1} parent=1 // pred_region
      %75 = dma.done [#allocation4], 256
    $region33: #{tpu_custom_call.1} parent=1 // pred_fallthru
      _
    // Predicated region
    $region34: #{tpu_custom_call.1} parent=1 // pred_check
      _
    $region35: #{tpu_custom_call.1} parent=1 // pred_check_branch
      %77 = sbr.rel (0) target = $region37
    $region36: #{tpu_custom_call.1} parent=1 // pred_region
      %79 = dma.done [#allocation7], 16
    $region37: #{tpu_custom_call.1} parent=1 // pred_fallthru
      _
    // Predicated region
    $region38: #{tpu_custom_call.1} parent=1 // pred_check
      _
    $region39: #{tpu_custom_call.1} parent=1 // pred_check_branch
      %81 = sbr.rel (0) target = $region41
    $region40: #{tpu_custom_call.1} parent=1 // pred_region
      %83 = dma.done [#allocation7], 2048
    $region41: #{tpu_custom_call.1} parent=1 // pred_fallthru
      _
    // Predicated region
    $region42: #{tpu_custom_call.1} parent=1 // pred_check
      _
    $region43: #{tpu_custom_call.1} parent=1 // pred_check_branch
      %85 = sbr.rel (0) target = $region45
    $region44: #{tpu_custom_call.1} parent=1 // pred_region
      %87 = dma.done [#allocation10], 1024
    $region45: #{tpu_custom_call.1} parent=1 // pred_fallthru
      _
    %p88 = scmp.eq.s32.totalorder 0, 0
    // Predicated region
    $region46: #{tpu_custom_call.1} parent=1 // pred_check
      %p89 = pneg %p88
    $region47: #{tpu_custom_call.1} parent=1 // pred_check_branch
      %91 = sbr.rel (%p89) target = $region49
    $region48: #{tpu_custom_call.1} parent=1 // pred_region
      %v92 = vld [vmem:[#allocation3] sm:$0xff]
      %v93 = vld [vmem:[#allocation3 + $0x8] sm:$0xff]
      %94 = vadd.xlane.f32.xlu0 %v92
      %v95 = vpop.xlane.xlu0 %94
      %96 = vadd.xlane.f32.xlu0 %v93
      %v97 = vpop.xlane.xlu0 %96
      %v98 = vmul.f32 %v95, 0.03125
      %v99 = vmul.f32 %v97, 0.03125
      %v100 = vsub.f32 %v92, %v98
      %v101 = vsub.f32 %v93, %v99
      %v102 = vlaneseq
      %v103 = vand.u32 %v102, 127
      %vm104 = vcmp.lt.s32.totalorder %v103, 32
      %v105 = vsel %vm104, %v100, 0.0
      %v106 = vsel %vm104, %v101, 0.0
      %v107 = vmul.f32 %v105, %v105
      %v108 = vmul.f32 %v106, %v106
      %109 = vadd.xlane.f32.xlu0 %v107
      %v110 = vpop.xlane.xlu0 %109
      %111 = vadd.xlane.f32.xlu0 %v108
      %v112 = vpop.xlane.xlu0 %111
      %v113 = vmul.f32 %v110, 0.03125
      %v114 = vmul.f32 %v112, 0.03125
      %v115 = vadd.f32 %v113, 1e-05
      %v116 = vadd.f32 %v114, 1e-05
      %v117 = vrsqrt.pop %v115
      %v118 = vmul.f32 %v117, %v115
      %v119 = vmul.f32 %v118, %v117
      %v120 = vmul.f32 0.5, %v119
      %v121 = vsub.f32 1.5, %v120
      %v122 = vmul.f32 %v117, %v121
      %vm123 = vweird.f32 %v115
      %vm124 = vweird.f32 %v117
      %vm125 = vmor %vm123, %vm124
      %v126 = vsel %vm125, %v117, %v122
      %v127 = vrsqrt.pop %v116
      %v128 = vmul.f32 %v127, %v116
      %v129 = vmul.f32 %v128, %v127
      %v130 = vmul.f32 0.5, %v129
      %v131 = vsub.f32 1.5, %v130
      %v132 = vmul.f32 %v127, %v131
      %vm133 = vweird.f32 %v116
      %vm134 = vweird.f32 %v127
      %vm135 = vmor %vm133, %vm134
      %v136 = vsel %vm135, %v127, %v132
      %v137 = vmul.f32 %v105, %v126
      %v138 = vmul.f32 %v106, %v136
      %v139 = vld [vmem:[#allocation6] sm:$0x1]
      %v141 = vperm.slane %v139, 0
      %v143 = vmul.f32 %v137, %v141
      %v144 = vmul.f32 %v138, %v141
      %v145 = vld [vmem:[%s2] sm:$0x1]
      %v147 = vperm.slane %v145, 0
      %v149 = vadd.f32 %v143, %v147
      %v150 = vadd.f32 %v144, %v147
      %v151 = vpack.c.bf16 %v149, %v149
      %v152 = vpack.c.bf16 %v150, %v150
      %153 = vst [vmem:[#allocation2] sm:$0xf] %v151
      %154 = vst [vmem:[#allocation2 + $0x4] sm:$0xf] %v152
      %v155 = vld [vmem:[%s6] sm:$0x1]
      %v157 = vperm.slane %v155, 0
      %v159 = vadd.f32 %v92, %v157
      %v160 = vadd.f32 %v93, %v157
      %161 = vst [vmem:[#allocation11] sm:$0xff] %v159
      %162 = vst [vmem:[#allocation11 + $0x8] sm:$0xff] %v160
    $region49: #{tpu_custom_call.1} parent=1 // pred_fallthru
      _
    %v163 = vld [vmem:[#allocation2] sm:$0xf]
    %v164 = vld [vmem:[#allocation2 + $0x4] sm:$0xf]
    %v165 = vld [vmem:[#allocation8] sm:$0xff]
    %v166 = vld [vmem:[#allocation8 + $0x8] sm:$0xff]
    %v167 = vld [vmem:[#allocation8 + $0x10] sm:$0xff]
    %v168 = vld [vmem:[#allocation8 + $0x18] sm:$0xff]
    %v169 = vld [vmem:[#allocation8 + $0x20] sm:$0xff]
    %v170 = vld [vmem:[#allocation8 + $0x28] sm:$0xff]
    %v171 = vld [vmem:[#allocation8 + $0x30] sm:$0xff]
    %v172 = vld [vmem:[#allocation8 + $0x38] sm:$0xff]
    %v173 = vld [vmem:[#allocation8 + $0x40] sm:$0xff]
    %v174 = vld [vmem:[#allocation8 + $0x48] sm:$0xff]
    %v175 = vld [vmem:[#allocation8 + $0x50] sm:$0xff]
    %v176 = vld [vmem:[#allocation8 + $0x58] sm:$0xff]
    %v177 = vld [vmem:[#allocation8 + $0x60] sm:$0xff]
    %v178 = vld [vmem:[#allocation8 + $0x68] sm:$0xff]
    %v179 = vld [vmem:[#allocation8 + $0x70] sm:$0xff]
    %v180 = vld [vmem:[#allocation8 + $0x78] sm:$0xff]
    %v181 = vld [vmem:[%s4] sm:$0x3]
    %v183 = vperm.slane %v181, 0
    %v184 = vperm.slane %v181, 1
    %v189 = vunpack.c.l.b16 %v163
    %v190 = vunpack.c.l.b16 %v164
    %v191 = vpack.c.b16 %v190, %v189
    %v209 = vunpack.c.l.b16 %v165
    %v210 = vunpack.c.h.b16 %v165
    %v211 = vunpack.c.l.b16 %v166
    %v212 = vunpack.c.h.b16 %v166
    %v213 = vunpack.c.l.b16 %v167
    %v214 = vunpack.c.h.b16 %v167
    %v215 = vunpack.c.l.b16 %v168
    %v216 = vunpack.c.h.b16 %v168
    %v217 = vunpack.c.l.b16 %v169
    %v218 = vunpack.c.h.b16 %v169
    %v219 = vunpack.c.l.b16 %v170
    %v220 = vunpack.c.h.b16 %v170
    %v221 = vunpack.c.l.b16 %v171
    %v222 = vunpack.c.h.b16 %v171
    %v223 = vunpack.c.l.b16 %v172
    %v224 = vunpack.c.h.b16 %v172
    %v225 = vunpack.c.l.b16 %v173
    %v226 = vunpack.c.h.b16 %v173
    %v227 = vunpack.c.l.b16 %v174
    %v228 = vunpack.c.h.b16 %v174
    %v229 = vunpack.c.l.b16 %v175
    %v230 = vunpack.c.h.b16 %v175
    %v231 = vunpack.c.l.b16 %v176
    %v232 = vunpack.c.h.b16 %v176
    %v233 = vunpack.c.l.b16 %v177
    %v234 = vunpack.c.h.b16 %v177
    %v235 = vunpack.c.l.b16 %v178
    %v236 = vunpack.c.h.b16 %v178
    %v237 = vunpack.c.l.b16 %v179
    %v238 = vunpack.c.h.b16 %v179
    %v239 = vunpack.c.l.b16 %v180
    %v240 = vunpack.c.h.b16 %v180
    %v241 = vpack.c.b16 %v211, %v209
    %v242 = vpack.c.b16 %v212, %v210
    %v243 = vpack.c.b16 %v215, %v213
    %v244 = vpack.c.b16 %v216, %v214
    %v245 = vpack.c.b16 %v219, %v217
    %v246 = vpack.c.b16 %v220, %v218
    %v247 = vpack.c.b16 %v223, %v221
    %v248 = vpack.c.b16 %v224, %v222
    %v249 = vpack.c.b16 %v227, %v225
    %v250 = vpack.c.b16 %v228, %v226
    %v251 = vpack.c.b16 %v231, %v229
    %v252 = vpack.c.b16 %v232, %v230
    %v253 = vpack.c.b16 %v235, %v233
    %v254 = vpack.c.b16 %v236, %v234
    %v255 = vpack.c.b16 %v239, %v237
    %v256 = vpack.c.b16 %v240, %v238
    %273 = vmatpush.bf16.msra.mxu0 %v255
    %274 = vmatpush.bf16.msra.mxu0 %v253
    %275 = vmatpush.bf16.msra.mxu0 %v251
    %276 = vmatpush.bf16.msra.mxu0 %v249
    %277 = vmatpush.bf16.msra.mxu0 %v247
    %278 = vmatpush.bf16.msra.mxu0 %v245
    %279 = vmatpush.bf16.msra.mxu0 %v243
    %280 = vmatpush.bf16.msra.mxu0 %v241
    %281 = vmatmul.bf16.gmra.mxu0 %v191
    %v282 = vpop.f32.mrf.mxu0
    %v283 = vadd.f32 %v183, %v282
    %v284 = vpop.f32.mrf.mxu0
    %v285 = vadd.f32 %v183, %v284
    %286 = vdwg.mxu0
    %287 = vmatpush.bf16.msra.mxu0 %v256
    %288 = vmatpush.bf16.msra.mxu0 %v254
    %289 = vmatpush.bf16.msra.mxu0 %v252
    %290 = vmatpush.bf16.msra.mxu0 %v250
    %291 = vmatpush.bf16.msra.mxu0 %v248
    %292 = vmatpush.bf16.msra.mxu0 %v246
    %293 = vmatpush.bf16.msra.mxu0 %v244
    %294 = vmatpush.bf16.msra.mxu0 %v242
    %295 = vmatmul.bf16.gmra.mxu0 %v191
    %v296 = vpop.f32.mrf.mxu0
    %v297 = vadd.f32 %v184, %v296
    %v298 = vpop.f32.mrf.mxu0
    %v299 = vadd.f32 %v184, %v298
    %300 = vdwg.mxu0
    %v301 = vxor.u32 %v297, 2147483648
    %v302 = vxor.u32 %v299, 2147483648
    %v303 = vmul.f32 %v301, 1.442695
    %v304 = vpow.pop %v303
    %v305 = vmul.f32 %v302, 1.442695
    %v306 = vpow.pop %v305
    %v307 = vadd.f32 %v304, 1.0
    %v308 = vadd.f32 %v306, 1.0
    %v309 = vrcp.pop %v307
    %v310 = vmul.f32 %v307, %v309
    %v311 = vsub.f32 1.0, %v310
    %v312 = vmul.f32 %v309, %v311
    %v313 = vadd.f32 %v309, %v312
    %vm314 = vweird.f32 %v307
    %vm315 = vweird.f32 %v309
    %vm316 = vmor %vm314, %vm315
    %v317 = vsel %vm316, %v309, %v313
    %v318 = vand.u32 2147483647, %v307
    %vm319 = vcmp.eq.f32.partialorder %v318, 8.507059e+37
    %v320 = vand.u32 %v307, 2147483648
    %v321 = vor.u32 1.1754944e-38, %v320
    %v322 = vsel %vm319, %v321, %v317
    %v323 = vmul.f32 1.0, %v322
    %v324 = vrcp.pop %v308
    %v325 = vmul.f32 %v308, %v324
    %v326 = vsub.f32 1.0, %v325
    %v327 = vmul.f32 %v324, %v326
    %v328 = vadd.f32 %v324, %v327
    %vm329 = vweird.f32 %v308
    %vm330 = vweird.f32 %v324
    %vm331 = vmor %vm329, %vm330
    %v332 = vsel %vm331, %v324, %v328
    %v333 = vand.u32 2147483647, %v308
    %vm334 = vcmp.eq.f32.partialorder %v333, 8.507059e+37
    %v335 = vand.u32 %v308, 2147483648
    %v336 = vor.u32 1.1754944e-38, %v335
    %v337 = vsel %vm334, %v336, %v332
    %v338 = vmul.f32 1.0, %v337
    %v339 = vmul.f32 %v283, 0.5
    %v340 = vmul.f32 %v285, 0.5
    %v341 = vmul.f32 %v283, 0.70710677
    %v342 = vmul.f32 %v285, 0.70710677
    %v343 = vmul.f32 %v341, %v341
    %v344 = vmin.f32 16.0, %v343
    %v345 = vmul.f32 %v344, 2.1237322e-06
    %v346 = vadd.f32 %v345, 0.00028619796
    %v347 = vmul.f32 %v344, %v346
    %v348 = vadd.f32 %v347, 0.0036580483
    %v349 = vmul.f32 %v344, %v348
    %v350 = vadd.f32 %v349, 0.05243302
    %v351 = vmul.f32 %v344, %v350
    %v352 = vadd.f32 %v351, 0.18741608
    %v353 = vmul.f32 %v344, %v352
    %v354 = vadd.f32 %v353, 1.1283791
    %v355 = vmul.f32 %v341, %v354
    %v356 = vmul.f32 %v344, 3.8918573e-05
    %v357 = vadd.f32 %v356, 0.001143296
    %v358 = vmul.f32 %v344, %v357
    %v359 = vadd.f32 %v358, 0.014752088
    %v360 = vmul.f32 %v344, %v359
    %v361 = vadd.f32 %v360, 0.112945676
    %v362 = vmul.f32 %v344, %v361
    %v363 = vadd.f32 %v362, 0.4994258
    %v364 = vmul.f32 %v344, %v363
    %v365 = vadd.f32 %v364, 1.0
    %v366 = vrcp.pop %v365
    %v367 = vmul.f32 %v365, %v366
    %v368 = vsub.f32 1.0, %v367
    %v369 = vmul.f32 %v366, %v368
    %v370 = vadd.f32 %v366, %v369
    %vm371 = vweird.f32 %v365
    %vm372 = vweird.f32 %v366
    %vm373 = vmor %vm371, %vm372
    %v374 = vsel %vm373, %v366, %v370
    %v375 = vand.u32 2147483647, %v365
    %vm376 = vcmp.eq.f32.partialorder %v375, 8.507059e+37
    %v377 = vand.u32 %v365, 2147483648
    %v378 = vor.u32 1.1754944e-38, %v377
    %v379 = vsel %vm376, %v378, %v374
    %v380 = vmul.f32 %v355, %v379
    %v381 = vmin.f32 %v380, 1.0
    %v382 = vmax.f32 %v381, -1.0
    %v383 = vmul.f32 %v342, %v342
    %v384 = vmin.f32 16.0, %v383
    %v385 = vmul.f32 %v384, 2.1237322e-06
    %v386 = vadd.f32 %v385, 0.00028619796
    %v387 = vmul.f32 %v384, %v386
    %v388 = vadd.f32 %v387, 0.0036580483
    %v389 = vmul.f32 %v384, %v388
    %v390 = vadd.f32 %v389, 0.05243302
    %v391 = vmul.f32 %v384, %v390
    %v392 = vadd.f32 %v391, 0.18741608
    %v393 = vmul.f32 %v384, %v392
    %v394 = vadd.f32 %v393, 1.1283791
    %v395 = vmul.f32 %v342, %v394
    %v396 = vmul.f32 %v384, 3.8918573e-05
    %v397 = vadd.f32 %v396, 0.001143296
    %v398 = vmul.f32 %v384, %v397
    %v399 = vadd.f32 %v398, 0.014752088
    %v400 = vmul.f32 %v384, %v399
    %v401 = vadd.f32 %v400, 0.112945676
    %v402 = vmul.f32 %v384, %v401
    %v403 = vadd.f32 %v402, 0.4994258
    %v404 = vmul.f32 %v384, %v403
    %v405 = vadd.f32 %v404, 1.0
    %v406 = vrcp.pop %v405
    %v407 = vmul.f32 %v405, %v406
    %v408 = vsub.f32 1.0, %v407
    %v409 = vmul.f32 %v406, %v408
    %v410 = vadd.f32 %v406, %v409
    %vm411 = vweird.f32 %v405
    %vm412 = vweird.f32 %v406
    %vm413 = vmor %vm411, %vm412
    %v414 = vsel %vm413, %v406, %v410
    %v415 = vand.u32 2147483647, %v405
    %vm416 = vcmp.eq.f32.partialorder %v415, 8.507059e+37
    %v417 = vand.u32 %v405, 2147483648
    %v418 = vor.u32 1.1754944e-38, %v417
    %v419 = vsel %vm416, %v418, %v414
    %v420 = vmul.f32 %v395, %v419
    %v421 = vmin.f32 %v420, 1.0
    %v422 = vmax.f32 %v421, -1.0
    %v423 = vadd.f32 %v382, 1.0
    %v424 = vadd.f32 %v422, 1.0
    %v425 = vmul.f32 %v339, %v423
    %v426 = vmul.f32 %v340, %v424
    %v427 = vmul.f32 %v425, %v323
    %v428 = vmul.f32 %v426, %v338
    %v429 = vpack.c.bf16 %v428, %v427
    %v430 = vld [vmem:[#allocation11] sm:$0xff]
    %v431 = vld [vmem:[#allocation11 + $0x8] sm:$0xff]
    %v432 = vld [vmem:[#allocation9] sm:$0xf]
    %v433 = vld [vmem:[#allocation9 + $0x4] sm:$0xf]
    %v434 = vld [vmem:[#allocation9 + $0x8] sm:$0xf]
    %v435 = vld [vmem:[#allocation9 + $0xc] sm:$0xf]
    %v436 = vld [vmem:[#allocation9 + $0x10] sm:$0xf]
    %v437 = vld [vmem:[#allocation9 + $0x14] sm:$0xf]
    %v438 = vld [vmem:[#allocation9 + $0x18] sm:$0xf]
    %v439 = vld [vmem:[#allocation9 + $0x1c] sm:$0xf]
    %v440 = vld [vmem:[#allocation9 + $0x20] sm:$0xf]
    %v441 = vld [vmem:[#allocation9 + $0x24] sm:$0xf]
    %v442 = vld [vmem:[#allocation9 + $0x28] sm:$0xf]
    %v443 = vld [vmem:[#allocation9 + $0x2c] sm:$0xf]
    %v444 = vld [vmem:[#allocation9 + $0x30] sm:$0xf]
    %v445 = vld [vmem:[#allocation9 + $0x34] sm:$0xf]
    %v446 = vld [vmem:[#allocation9 + $0x38] sm:$0xf]
    %v447 = vld [vmem:[#allocation9 + $0x3c] sm:$0xf]
    %v464 = vunpack.c.l.b16 %v432
    %v465 = vunpack.c.l.b16 %v433
    %v466 = vunpack.c.l.b16 %v434
    %v467 = vunpack.c.l.b16 %v435
    %v468 = vunpack.c.l.b16 %v436
    %v469 = vunpack.c.l.b16 %v437
    %v470 = vunpack.c.l.b16 %v438
    %v471 = vunpack.c.l.b16 %v439
    %v472 = vunpack.c.l.b16 %v440
    %v473 = vunpack.c.l.b16 %v441
    %v474 = vunpack.c.l.b16 %v442
    %v475 = vunpack.c.l.b16 %v443
    %v476 = vunpack.c.l.b16 %v444
    %v477 = vunpack.c.l.b16 %v445
    %v478 = vunpack.c.l.b16 %v446
    %v479 = vunpack.c.l.b16 %v447
    %v480 = vpack.c.b16 %v465, %v464
    %v481 = vpack.c.b16 %v467, %v466
    %v482 = vpack.c.b16 %v469, %v468
    %v483 = vpack.c.b16 %v471, %v470
    %v484 = vpack.c.b16 %v473, %v472
    %v485 = vpack.c.b16 %v475, %v474
    %v486 = vpack.c.b16 %v477, %v476
    %v487 = vpack.c.b16 %v479, %v478
    %496 = vmatpush.bf16.msra.mxu0 %v487
    %497 = vmatpush.bf16.msra.mxu0 %v486
    %498 = vmatpush.bf16.msra.mxu0 %v485
    %499 = vmatpush.bf16.msra.mxu0 %v484
    %500 = vmatpush.bf16.msra.mxu0 %v483
    %501 = vmatpush.bf16.msra.mxu0 %v482
    %502 = vmatpush.bf16.msra.mxu0 %v481
    %503 = vmatpush.bf16.msra.mxu0 %v480
    %504 = vmatmul.bf16.gmra.mxu0 %v429
    %v505 = vpop.f32.mrf.mxu0
    %v506 = vadd.f32 0.0, %v505
    %v507 = vpop.f32.mrf.mxu0
    %v508 = vadd.f32 0.0, %v507
    %509 = vdwg.mxu0
    %v510 = vadd.f32 %v430, %v506
    %v511 = vadd.f32 %v431, %v508
    %512 = vst [vmem:[#allocation11] sm:$0xff] %v510
    %513 = vst [vmem:[#allocation11 + $0x8] sm:$0xff] %v511
    // Predicated region
    $region50: #{tpu_custom_call.1} parent=1 // pred_check
      _
    $region51: #{tpu_custom_call.1} parent=1 // pred_check_branch
      %515 = sbr.rel (0) target = $region53
    $region52: #{tpu_custom_call.1} parent=1 // pred_region
      %517 = vsyncadd [#allocation5], 0
      %s518 = sshll.u32 [#allocation11], 4
      %s519 = int_to_ptr.vmem [resolvable:$true] %s518
      %s520 = sshll.u32 %s7, 4
      %s521 = int_to_ptr.hbm [resolvable:$true] %s520
      %526 = dma.vmem_to_hbm [thread:$0]  %s519, 256, %s521, [#allocation5], 128, 128, 8
    $region53: #{tpu_custom_call.1} parent=1 // pred_fallthru
      _
    // Predicated region
    $region54: #{tpu_custom_call.1} parent=1 // pred_check
      _
    $region55: #{tpu_custom_call.1} parent=1 // pred_check_branch
      %528 = sbr.rel (0) target = $region57
    $region56: #{tpu_custom_call.1} parent=1 // pred_region
      %530 = dma.done [#allocation5], 256
    $region57: #{tpu_custom_call.1} parent=1 // pred_fallthru
      _
    %531 = vsyncpa [#allocation4], 1
    %532 = vsyncpa [#allocation7], 1
    %533 = vsyncpa [#allocation10], 1
    %534 = vsyncpa [#allocation5], 1

</llo_original>
